<compile_context>
chip_gen: v7x
topology: tpu7x:2x2x1
jax: 0.10.0
libtpu: 0.0.40
codegen_flags: <defaults>
</compile_context>

<pallas_src>
import functools

import jax
import jax.numpy as jnp
from jax import lax
from jax.experimental import pallas as pl
from jax.experimental.pallas import tpu as pltpu

_LANE = 128


def _flux_and_absdfdu(u):
    """Fused f_real(u) and |f_real'(u)| with shared powers.

    f(u)  = 1.5 u + 0.625 u^2 - (13/6) u^3 + 1.25 u^4 - (5/24) u^6
    f'(u) = 1.5 + 1.25 u - 6.5 u^2 + 5 u^3 - 1.25 u^5
    (Expanded form of the PyTorch f_real and its autograd derivative.)
    """
    u2 = u * u
    u3 = u2 * u
    u4 = u2 * u2
    u5 = u4 * u
    u6 = u4 * u2
    f = 1.5 * u + 0.625 * u2 - (13.0 / 6.0) * u3 + 1.25 * u4 - (5.0 / 24.0) * u6
    fp = 1.5 + 1.25 * u - 6.5 * u2 + 5.0 * u3 - 1.25 * u5
    return f, jnp.abs(fp)


def _shift_left(x):
    """result[..., j] = x[..., j+1]   (wrap-around only touches padding)."""
    n = x.shape[-1]
    return pltpu.roll(x, shift=n - 1, axis=x.ndim - 1)


def _shift_right(x):
    """result[..., j] = x[..., j-1]   (wrap-around only touches padding)."""
    return pltpu.roll(x, shift=1, axis=x.ndim - 1)


def _block_kernel(init_ref, traj_ref, u_old_ref, *, N, t_blk, dtdx):
    """Advance t_blk explicit finite-volume (Rusanov) time steps.

    init_ref : VMEM (B, Np)        f32  -- initial condition (padded)
    traj_ref : VMEM (t_blk, B, Np) f32  -- output rows for this time block
    u_old_ref: VMEM (B, Np)        f32  -- carried state across grid steps
    """
    i = pl.program_id(0)

    @pl.when(i == 0)
    def _():
        u_old_ref[...] = init_ref[...]

    B, Np = u_old_ref.shape
    dtdx_f = jnp.float32(dtdx)

    # Hoisted column masks (broadcasts are not CSE'd -> build once per block).
    col = lax.broadcasted_iota(jnp.int32, (B, Np), 1)
    is_first = col == 0
    is_last = col == (N - 1)
    is_pad = col >= N

    def one_step(u):
        f, dfdu = _flux_and_absdfdu(u)
        f_p = _shift_left(f)          # f[j+1]
        u_p = _shift_left(u)          # u[j+1]
        d_p = _shift_left(dfdu)       # dfdu[j+1]
        m = jnp.maximum(dfdu, d_p)
        # numerical flux at interface j (valid for j = 0 .. N-2)
        f_half = 0.5 * (f + f_p) - 0.5 * m * (u_p - u)
        f_half_m = _shift_right(f_half)                    # f_half[j-1]
        # interior update (valid for j = 1 .. N-2)
        u_cand = u - dtdx_f * (f_half - f_half_m)
        # boundary conditions: u[0] = u[1], u[N-1] = u[N-2]; zero the padding.
        u_next = _shift_left(u_cand)                       # u_cand[j+1]
        u_prev = _shift_right(u_cand)                      # u_cand[j-1]
        u_new = jnp.where(is_first, u_next, u_cand)
        u_new = jnp.where(is_last, u_prev, u_new)
        u_new = jnp.where(is_pad, 0.0, u_new)
        return u_new

    def body(t, u):
        u_new = one_step(u)
        traj_ref[t, :, :] = u_new
        return u_new

    u_final = lax.fori_loop(0, t_blk, body, u_old_ref[...], unroll=True)
    u_old_ref[...] = u_final


def variant_coe_linear1d_forward(init, dt, dx, stepnum, *, t_blk=8):
    """Pallas equivalent of VariantCoeLinear1d.forward(init, stepnum).

    init: (batch, N) float32. Returns (stepnum+1, batch, N) float32.
    """
    init = init.astype(jnp.float32)
    B, N = init.shape
    if stepnum <= 0:
        return init[None, :, :]

    Np = ((N + _LANE - 1) // _LANE) * _LANE          # lane-dense spatial width
    n_blocks = -(-stepnum // t_blk)                  # ceil div
    steps_pad = n_blocks * t_blk

    init_p = jnp.pad(init, ((0, 0), (0, Np - N)))    # zero-pad lanes >= N

    kernel = functools.partial(
        _block_kernel, N=N, t_blk=t_blk, dtdx=float(dt) / float(dx))

    traj = pl.pallas_call(
        kernel,
        out_shape=jax.ShapeDtypeStruct((steps_pad, B, Np), jnp.float32),
        grid_spec=pltpu.PrefetchScalarGridSpec(
            num_scalar_prefetch=0,
            grid=(n_blocks,),
            in_specs=[
                pl.BlockSpec((B, Np), lambda i: (0, 0)),      # init (resident)
            ],
            out_specs=pl.BlockSpec((t_blk, B, Np), lambda i: (i, 0, 0)),
            scratch_shapes=[pltpu.VMEM((B, Np), jnp.float32)],  # carried u_old
        ),
        compiler_params=pltpu.CompilerParams(
            dimension_semantics=("arbitrary",),   # sequential time stepping
        ),
    )(init_p)

    return jnp.concatenate([init[None, :, :], traj[:stepnum, :, :N]], axis=0)


def _reference_forward(init, dt, dx, stepnum):
    """Pure-JAX reference reproducing the PyTorch forward semantics
    (factored f_real / autograd-derivative form, slice-based stencil)."""
    B, N = init.shape
    dtdx = jnp.float32(dt / dx)
    u = init.astype(jnp.float32)
    rows = [u]
    for _ in range(stepnum):
        u2 = u * u
        f = 0.5 * u * (3.0 - u2) + (10.0 / 12.0) * u2 * (
            0.75 - 2.0 * u + 1.5 * u2 - 0.25 * u2 * u2)
        fp = (1.5 - 1.5 * u2) + (10.0 / 12.0) * (
            1.5 * u - 6.0 * u2 + 6.0 * u2 * u - 1.5 * u2 * u2 * u)
        dfdu = jnp.abs(fp)
        m = jnp.maximum(dfdu[:, 0:N - 1], dfdu[:, 1:N])
        f_half = 0.5 * (f[:, 0:N - 1] + f[:, 1:N]) - 0.5 * m * (u[:, 1:N] - u[:, 0:N - 1])
        u_int = u[:, 1:N - 1] - dtdx * (f_half[:, 1:N - 1] - f_half[:, 0:N - 2])
        u = jnp.concatenate([u_int[:, 0:1], u_int, u_int[:, -1:]], axis=1)
        rows.append(u)
    return jnp.stack(rows, axis=0)


if __name__ == "__main__":
    key = jax.random.PRNGKey(0)
    B, N = 2, 200          # batch_size=2, N=200 grid cells (matches module name)
    stepnum = 20           # exercises multiple time blocks + remainder slicing
    X = 10.0
    dx = X / N             # buffer dx
    dt = 0.4 * dx          # buffer dt (CFL-like, deterministic)

    init = jax.random.uniform(key, (B, N), dtype=jnp.float32, minval=0.0, maxval=1.0)

    traj = variant_coe_linear1d_forward(init, dt, dx, stepnum, t_blk=8)
    traj = jax.block_until_ready(traj)

    ref = _reference_forward(init, dt, dx, stepnum)
    assert traj.shape == (stepnum + 1, B, N)
    assert jnp.allclose(traj, ref, atol=1e-4, rtol=1e-4), "mismatch vs reference"

    print("KERNEL_OK")
</pallas_src>

<mosaic_0001>
module attributes {stable_mosaic.version = 11 : i64} {
  func.func @_block_kernel(%arg0: i32, %arg1: memref<2x256xf32, #tpu.memory_space<vmem>>, %arg2: memref<8x2x256xf32, #tpu.memory_space<vmem>>, %arg3: memref<2x256xf32, #tpu.memory_space<vmem>>) attributes {dimension_semantics = [#tpu.dimension_semantics<arbitrary>], iteration_bounds = array<i64: 3>, scalar_prefetch = 0 : i64, scratch_operands = 1 : i64, tpu.core_type = #tpu.core_type<tc>, window_params = [{pipeline_mode = #tpu.pipeline_mode<synchronous>, transform_indices = @transform_0, window_bounds = array<i64: 2, 256>}, {transform_indices = @transform_1, window_bounds = array<i64: 8, 2, 256>}]} {
    %c0_i32 = arith.constant 0 : i32
    %0 = arith.cmpi eq, %arg0, %c0_i32 : i32
    %1 = arith.extui %0 : i1 to i32
    %c0_i32_0 = arith.constant 0 : i32
    %2 = arith.cmpi ne, %1, %c0_i32_0 : i32
    scf.if %2 {
      %c0_173 = arith.constant 0 : index
      %c0_174 = arith.constant 0 : index
      %492 = vector.load %arg1[%c0_173, %c0_174] : memref<2x256xf32, #tpu.memory_space<vmem>>, vector<2x256xf32>
      %c0_175 = arith.constant 0 : index
      %c0_176 = arith.constant 0 : index
      %493 = vector.load %arg3[%c0_175, %c0_176] : memref<2x256xf32, #tpu.memory_space<vmem>>, vector<2x256xf32>
      tpu.vector_store %arg3[%c0_175, %c0_176], %492 {strides = array<i32>} : memref<2x256xf32, #tpu.memory_space<vmem>>, vector<2x256xf32>,
    } else {
    }
    %3 = tpu.iota {dimensions = array<i32: 1>} : vector<2x256xi32>
    %c0_i32_1 = arith.constant 0 : i32
    %4 = vector.broadcast %c0_i32_1 : i32 to vector<2x256xi32>
    %5 = arith.cmpi eq, %3, %4 : vector<2x256xi32>
    %c199_i32 = arith.constant 199 : i32
    %6 = vector.broadcast %c199_i32 : i32 to vector<2x256xi32>
    %7 = arith.cmpi eq, %3, %6 : vector<2x256xi32>
    %c200_i32 = arith.constant 200 : i32
    %8 = vector.broadcast %c200_i32 : i32 to vector<2x256xi32>
    %9 = arith.cmpi sge, %3, %8 : vector<2x256xi32>
    %c0 = arith.constant 0 : index
    %c0_2 = arith.constant 0 : index
    %10 = vector.load %arg3[%c0, %c0_2] : memref<2x256xf32, #tpu.memory_space<vmem>>, vector<2x256xf32>
    %cst = arith.constant 4.000000e-01 : f32
    %c0_i32_3 = arith.constant 0 : i32
    %11 = arith.mulf %10, %10 : vector<2x256xf32>
    %12 = arith.mulf %11, %10 : vector<2x256xf32>
    %13 = arith.mulf %11, %11 : vector<2x256xf32>
    %14 = arith.mulf %13, %10 : vector<2x256xf32>
    %15 = arith.mulf %13, %11 : vector<2x256xf32>
    %cst_4 = arith.constant 1.500000e+00 : f32
    %16 = vector.broadcast %cst_4 : f32 to vector<2x256xf32>
    %17 = arith.mulf %16, %10 : vector<2x256xf32>
    %cst_5 = arith.constant 6.250000e-01 : f32
    %18 = vector.broadcast %cst_5 : f32 to vector<2x256xf32>
    %19 = arith.mulf %18, %11 : vector<2x256xf32>
    %20 = arith.addf %17, %19 : vector<2x256xf32>
    %cst_6 = arith.constant 2.16666675 : f32
    %21 = vector.broadcast %cst_6 : f32 to vector<2x256xf32>
    %22 = arith.mulf %21, %12 : vector<2x256xf32>
    %23 = arith.subf %20, %22 : vector<2x256xf32>
    %cst_7 = arith.constant 1.250000e+00 : f32
    %24 = vector.broadcast %cst_7 : f32 to vector<2x256xf32>
    %25 = arith.mulf %24, %13 : vector<2x256xf32>
    %26 = arith.addf %23, %25 : vector<2x256xf32>
    %cst_8 = arith.constant 0.208333328 : f32
    %27 = vector.broadcast %cst_8 : f32 to vector<2x256xf32>
    %28 = arith.mulf %27, %15 : vector<2x256xf32>
    %29 = arith.subf %26, %28 : vector<2x256xf32>
    %cst_9 = arith.constant 1.250000e+00 : f32
    %30 = vector.broadcast %cst_9 : f32 to vector<2x256xf32>
    %31 = arith.mulf %30, %10 : vector<2x256xf32>
    %cst_10 = arith.constant 1.500000e+00 : f32
    %32 = vector.broadcast %cst_10 : f32 to vector<2x256xf32>
    %33 = arith.addf %32, %31 : vector<2x256xf32>
    %cst_11 = arith.constant 6.500000e+00 : f32
    %34 = vector.broadcast %cst_11 : f32 to vector<2x256xf32>
    %35 = arith.mulf %34, %11 : vector<2x256xf32>
    %36 = arith.subf %33, %35 : vector<2x256xf32>
    %cst_12 = arith.constant 5.000000e+00 : f32
    %37 = vector.broadcast %cst_12 : f32 to vector<2x256xf32>
    %38 = arith.mulf %37, %12 : vector<2x256xf32>
    %39 = arith.addf %36, %38 : vector<2x256xf32>
    %cst_13 = arith.constant 1.250000e+00 : f32
    %40 = vector.broadcast %cst_13 : f32 to vector<2x256xf32>
    %41 = arith.mulf %40, %14 : vector<2x256xf32>
    %42 = arith.subf %39, %41 : vector<2x256xf32>
    %43 = math.absf %42 : vector<2x256xf32>
    %c255_i32 = arith.constant 255 : i32
    %44 = tpu.dynamic_rotate %29 by %c255_i32 dim 1 : vector<2x256xf32>, i32 -> vector<2x256xf32>
    %c255_i32_14 = arith.constant 255 : i32
    %45 = tpu.dynamic_rotate %10 by %c255_i32_14 dim 1 : vector<2x256xf32>, i32 -> vector<2x256xf32>
    %c255_i32_15 = arith.constant 255 : i32
    %46 = tpu.dynamic_rotate %43 by %c255_i32_15 dim 1 : vector<2x256xf32>, i32 -> vector<2x256xf32>
    %47 = arith.maximumf %43, %46 : vector<2x256xf32>
    %48 = arith.addf %29, %44 : vector<2x256xf32>
    %cst_16 = arith.constant 5.000000e-01 : f32
    %49 = vector.broadcast %cst_16 : f32 to vector<2x256xf32>
    %50 = arith.mulf %49, %48 : vector<2x256xf32>
    %cst_17 = arith.constant 5.000000e-01 : f32
    %51 = vector.broadcast %cst_17 : f32 to vector<2x256xf32>
    %52 = arith.mulf %51, %47 : vector<2x256xf32>
    %53 = arith.subf %45, %10 : vector<2x256xf32>
    %54 = arith.mulf %52, %53 : vector<2x256xf32>
    %55 = arith.subf %50, %54 : vector<2x256xf32>
    %c1_i32 = arith.constant 1 : i32
    %56 = tpu.dynamic_rotate %55 by %c1_i32 dim 1 : vector<2x256xf32>, i32 -> vector<2x256xf32>
    %57 = arith.subf %55, %56 : vector<2x256xf32>
    %58 = vector.broadcast %cst : f32 to vector<2x256xf32>
    %59 = arith.mulf %58, %57 : vector<2x256xf32>
    %60 = arith.subf %10, %59 : vector<2x256xf32>
    %c255_i32_18 = arith.constant 255 : i32
    %61 = tpu.dynamic_rotate %60 by %c255_i32_18 dim 1 : vector<2x256xf32>, i32 -> vector<2x256xf32>
    %c1_i32_19 = arith.constant 1 : i32
    %62 = tpu.dynamic_rotate %60 by %c1_i32_19 dim 1 : vector<2x256xf32>, i32 -> vector<2x256xf32>
    %63 = arith.select %5, %61, %60 : vector<2x256xi1>, vector<2x256xf32>
    %64 = arith.select %7, %62, %63 : vector<2x256xi1>, vector<2x256xf32>
    %cst_20 = arith.constant 0.000000e+00 : f32
    %65 = vector.broadcast %cst_20 : f32 to vector<2x256xf32>
    %66 = arith.select %9, %65, %64 : vector<2x256xi1>, vector<2x256xf32>
    %67 = arith.index_cast %c0_i32_3 : i32 to index
    %c0_21 = arith.constant 0 : index
    %c0_22 = arith.constant 0 : index
    %68 = vector.load %arg2[%67, %c0_21, %c0_22] : memref<8x2x256xf32, #tpu.memory_space<vmem>>, vector<1x2x256xf32>
    %69 = vector.shape_cast %68 : vector<1x2x256xf32> to vector<2x256xf32>
    %70 = vector.shape_cast %66 : vector<2x256xf32> to vector<1x2x256xf32>
    tpu.vector_store %arg2[%67, %c0_21, %c0_22], %70 {strides = array<i32>} : memref<8x2x256xf32, #tpu.memory_space<vmem>>, vector<1x2x256xf32>,
    %c1_i32_23 = arith.constant 1 : i32
    %71 = arith.mulf %66, %66 : vector<2x256xf32>
    %72 = arith.mulf %71, %66 : vector<2x256xf32>
    %73 = arith.mulf %71, %71 : vector<2x256xf32>
    %74 = arith.mulf %73, %66 : vector<2x256xf32>
    %75 = arith.mulf %73, %71 : vector<2x256xf32>
    %cst_24 = arith.constant 1.500000e+00 : f32
    %76 = vector.broadcast %cst_24 : f32 to vector<2x256xf32>
    %77 = arith.mulf %76, %66 : vector<2x256xf32>
    %cst_25 = arith.constant 6.250000e-01 : f32
    %78 = vector.broadcast %cst_25 : f32 to vector<2x256xf32>
    %79 = arith.mulf %78, %71 : vector<2x256xf32>
    %80 = arith.addf %77, %79 : vector<2x256xf32>
    %cst_26 = arith.constant 2.16666675 : f32
    %81 = vector.broadcast %cst_26 : f32 to vector<2x256xf32>
    %82 = arith.mulf %81, %72 : vector<2x256xf32>
    %83 = arith.subf %80, %82 : vector<2x256xf32>
    %cst_27 = arith.constant 1.250000e+00 : f32
    %84 = vector.broadcast %cst_27 : f32 to vector<2x256xf32>
    %85 = arith.mulf %84, %73 : vector<2x256xf32>
    %86 = arith.addf %83, %85 : vector<2x256xf32>
    %cst_28 = arith.constant 0.208333328 : f32
    %87 = vector.broadcast %cst_28 : f32 to vector<2x256xf32>
    %88 = arith.mulf %87, %75 : vector<2x256xf32>
    %89 = arith.subf %86, %88 : vector<2x256xf32>
    %cst_29 = arith.constant 1.250000e+00 : f32
    %90 = vector.broadcast %cst_29 : f32 to vector<2x256xf32>
    %91 = arith.mulf %90, %66 : vector<2x256xf32>
    %cst_30 = arith.constant 1.500000e+00 : f32
    %92 = vector.broadcast %cst_30 : f32 to vector<2x256xf32>
    %93 = arith.addf %92, %91 : vector<2x256xf32>
    %cst_31 = arith.constant 6.500000e+00 : f32
    %94 = vector.broadcast %cst_31 : f32 to vector<2x256xf32>
    %95 = arith.mulf %94, %71 : vector<2x256xf32>
    %96 = arith.subf %93, %95 : vector<2x256xf32>
    %cst_32 = arith.constant 5.000000e+00 : f32
    %97 = vector.broadcast %cst_32 : f32 to vector<2x256xf32>
    %98 = arith.mulf %97, %72 : vector<2x256xf32>
    %99 = arith.addf %96, %98 : vector<2x256xf32>
    %cst_33 = arith.constant 1.250000e+00 : f32
    %100 = vector.broadcast %cst_33 : f32 to vector<2x256xf32>
    %101 = arith.mulf %100, %74 : vector<2x256xf32>
    %102 = arith.subf %99, %101 : vector<2x256xf32>
    %103 = math.absf %102 : vector<2x256xf32>
    %c255_i32_34 = arith.constant 255 : i32
    %104 = tpu.dynamic_rotate %89 by %c255_i32_34 dim 1 : vector<2x256xf32>, i32 -> vector<2x256xf32>
    %c255_i32_35 = arith.constant 255 : i32
    %105 = tpu.dynamic_rotate %66 by %c255_i32_35 dim 1 : vector<2x256xf32>, i32 -> vector<2x256xf32>
    %c255_i32_36 = arith.constant 255 : i32
    %106 = tpu.dynamic_rotate %103 by %c255_i32_36 dim 1 : vector<2x256xf32>, i32 -> vector<2x256xf32>
    %107 = arith.maximumf %103, %106 : vector<2x256xf32>
    %108 = arith.addf %89, %104 : vector<2x256xf32>
    %cst_37 = arith.constant 5.000000e-01 : f32
    %109 = vector.broadcast %cst_37 : f32 to vector<2x256xf32>
    %110 = arith.mulf %109, %108 : vector<2x256xf32>
    %cst_38 = arith.constant 5.000000e-01 : f32
    %111 = vector.broadcast %cst_38 : f32 to vector<2x256xf32>
    %112 = arith.mulf %111, %107 : vector<2x256xf32>
    %113 = arith.subf %105, %66 : vector<2x256xf32>
    %114 = arith.mulf %112, %113 : vector<2x256xf32>
    %115 = arith.subf %110, %114 : vector<2x256xf32>
    %c1_i32_39 = arith.constant 1 : i32
    %116 = tpu.dynamic_rotate %115 by %c1_i32_39 dim 1 : vector<2x256xf32>, i32 -> vector<2x256xf32>
    %117 = arith.subf %115, %116 : vector<2x256xf32>
    %118 = vector.broadcast %cst : f32 to vector<2x256xf32>
    %119 = arith.mulf %118, %117 : vector<2x256xf32>
    %120 = arith.subf %66, %119 : vector<2x256xf32>
    %c255_i32_40 = arith.constant 255 : i32
    %121 = tpu.dynamic_rotate %120 by %c255_i32_40 dim 1 : vector<2x256xf32>, i32 -> vector<2x256xf32>
    %c1_i32_41 = arith.constant 1 : i32
    %122 = tpu.dynamic_rotate %120 by %c1_i32_41 dim 1 : vector<2x256xf32>, i32 -> vector<2x256xf32>
    %123 = arith.select %5, %121, %120 : vector<2x256xi1>, vector<2x256xf32>
    %124 = arith.select %7, %122, %123 : vector<2x256xi1>, vector<2x256xf32>
    %cst_42 = arith.constant 0.000000e+00 : f32
    %125 = vector.broadcast %cst_42 : f32 to vector<2x256xf32>
    %126 = arith.select %9, %125, %124 : vector<2x256xi1>, vector<2x256xf32>
    %127 = arith.index_cast %c1_i32_23 : i32 to index
    %c0_43 = arith.constant 0 : index
    %c0_44 = arith.constant 0 : index
    %128 = vector.load %arg2[%127, %c0_43, %c0_44] : memref<8x2x256xf32, #tpu.memory_space<vmem>>, vector<1x2x256xf32>
    %129 = vector.shape_cast %128 : vector<1x2x256xf32> to vector<2x256xf32>
    %130 = vector.shape_cast %126 : vector<2x256xf32> to vector<1x2x256xf32>
    tpu.vector_store %arg2[%127, %c0_43, %c0_44], %130 {strides = array<i32>} : memref<8x2x256xf32, #tpu.memory_space<vmem>>, vector<1x2x256xf32>,
    %c2_i32 = arith.constant 2 : i32
    %131 = arith.mulf %126, %126 : vector<2x256xf32>
    %132 = arith.mulf %131, %126 : vector<2x256xf32>
    %133 = arith.mulf %131, %131 : vector<2x256xf32>
    %134 = arith.mulf %133, %126 : vector<2x256xf32>
    %135 = arith.mulf %133, %131 : vector<2x256xf32>
    %cst_45 = arith.constant 1.500000e+00 : f32
    %136 = vector.broadcast %cst_45 : f32 to vector<2x256xf32>
    %137 = arith.mulf %136, %126 : vector<2x256xf32>
    %cst_46 = arith.constant 6.250000e-01 : f32
    %138 = vector.broadcast %cst_46 : f32 to vector<2x256xf32>
    %139 = arith.mulf %138, %131 : vector<2x256xf32>
    %140 = arith.addf %137, %139 : vector<2x256xf32>
    %cst_47 = arith.constant 2.16666675 : f32
    %141 = vector.broadcast %cst_47 : f32 to vector<2x256xf32>
    %142 = arith.mulf %141, %132 : vector<2x256xf32>
    %143 = arith.subf %140, %142 : vector<2x256xf32>
    %cst_48 = arith.constant 1.250000e+00 : f32
    %144 = vector.broadcast %cst_48 : f32 to vector<2x256xf32>
    %145 = arith.mulf %144, %133 : vector<2x256xf32>
    %146 = arith.addf %143, %145 : vector<2x256xf32>
    %cst_49 = arith.constant 0.208333328 : f32
    %147 = vector.broadcast %cst_49 : f32 to vector<2x256xf32>
    %148 = arith.mulf %147, %135 : vector<2x256xf32>
    %149 = arith.subf %146, %148 : vector<2x256xf32>
    %cst_50 = arith.constant 1.250000e+00 : f32
    %150 = vector.broadcast %cst_50 : f32 to vector<2x256xf32>
    %151 = arith.mulf %150, %126 : vector<2x256xf32>
    %cst_51 = arith.constant 1.500000e+00 : f32
    %152 = vector.broadcast %cst_51 : f32 to vector<2x256xf32>
    %153 = arith.addf %152, %151 : vector<2x256xf32>
    %cst_52 = arith.constant 6.500000e+00 : f32
    %154 = vector.broadcast %cst_52 : f32 to vector<2x256xf32>
    %155 = arith.mulf %154, %131 : vector<2x256xf32>
    %156 = arith.subf %153, %155 : vector<2x256xf32>
    %cst_53 = arith.constant 5.000000e+00 : f32
    %157 = vector.broadcast %cst_53 : f32 to vector<2x256xf32>
    %158 = arith.mulf %157, %132 : vector<2x256xf32>
    %159 = arith.addf %156, %158 : vector<2x256xf32>
    %cst_54 = arith.constant 1.250000e+00 : f32
    %160 = vector.broadcast %cst_54 : f32 to vector<2x256xf32>
    %161 = arith.mulf %160, %134 : vector<2x256xf32>
    %162 = arith.subf %159, %161 : vector<2x256xf32>
    %163 = math.absf %162 : vector<2x256xf32>
    %c255_i32_55 = arith.constant 255 : i32
    %164 = tpu.dynamic_rotate %149 by %c255_i32_55 dim 1 : vector<2x256xf32>, i32 -> vector<2x256xf32>
    %c255_i32_56 = arith.constant 255 : i32
    %165 = tpu.dynamic_rotate %126 by %c255_i32_56 dim 1 : vector<2x256xf32>, i32 -> vector<2x256xf32>
    %c255_i32_57 = arith.constant 255 : i32
    %166 = tpu.dynamic_rotate %163 by %c255_i32_57 dim 1 : vector<2x256xf32>, i32 -> vector<2x256xf32>
    %167 = arith.maximumf %163, %166 : vector<2x256xf32>
    %168 = arith.addf %149, %164 : vector<2x256xf32>
    %cst_58 = arith.constant 5.000000e-01 : f32
    %169 = vector.broadcast %cst_58 : f32 to vector<2x256xf32>
    %170 = arith.mulf %169, %168 : vector<2x256xf32>
    %cst_59 = arith.constant 5.000000e-01 : f32
    %171 = vector.broadcast %cst_59 : f32 to vector<2x256xf32>
    %172 = arith.mulf %171, %167 : vector<2x256xf32>
    %173 = arith.subf %165, %126 : vector<2x256xf32>
    %174 = arith.mulf %172, %173 : vector<2x256xf32>
    %175 = arith.subf %170, %174 : vector<2x256xf32>
    %c1_i32_60 = arith.constant 1 : i32
    %176 = tpu.dynamic_rotate %175 by %c1_i32_60 dim 1 : vector<2x256xf32>, i32 -> vector<2x256xf32>
    %177 = arith.subf %175, %176 : vector<2x256xf32>
    %178 = vector.broadcast %cst : f32 to vector<2x256xf32>
    %179 = arith.mulf %178, %177 : vector<2x256xf32>
    %180 = arith.subf %126, %179 : vector<2x256xf32>
    %c255_i32_61 = arith.constant 255 : i32
    %181 = tpu.dynamic_rotate %180 by %c255_i32_61 dim 1 : vector<2x256xf32>, i32 -> vector<2x256xf32>
    %c1_i32_62 = arith.constant 1 : i32
    %182 = tpu.dynamic_rotate %180 by %c1_i32_62 dim 1 : vector<2x256xf32>, i32 -> vector<2x256xf32>
    %183 = arith.select %5, %181, %180 : vector<2x256xi1>, vector<2x256xf32>
    %184 = arith.select %7, %182, %183 : vector<2x256xi1>, vector<2x256xf32>
    %cst_63 = arith.constant 0.000000e+00 : f32
    %185 = vector.broadcast %cst_63 : f32 to vector<2x256xf32>
    %186 = arith.select %9, %185, %184 : vector<2x256xi1>, vector<2x256xf32>
    %187 = arith.index_cast %c2_i32 : i32 to index
    %c0_64 = arith.constant 0 : index
    %c0_65 = arith.constant 0 : index
    %188 = vector.load %arg2[%187, %c0_64, %c0_65] : memref<8x2x256xf32, #tpu.memory_space<vmem>>, vector<1x2x256xf32>
    %189 = vector.shape_cast %188 : vector<1x2x256xf32> to vector<2x256xf32>
    %190 = vector.shape_cast %186 : vector<2x256xf32> to vector<1x2x256xf32>
    tpu.vector_store %arg2[%187, %c0_64, %c0_65], %190 {strides = array<i32>} : memref<8x2x256xf32, #tpu.memory_space<vmem>>, vector<1x2x256xf32>,
    %c3_i32 = arith.constant 3 : i32
    %191 = arith.mulf %186, %186 : vector<2x256xf32>
    %192 = arith.mulf %191, %186 : vector<2x256xf32>
    %193 = arith.mulf %191, %191 : vector<2x256xf32>
    %194 = arith.mulf %193, %186 : vector<2x256xf32>
    %195 = arith.mulf %193, %191 : vector<2x256xf32>
    %cst_66 = arith.constant 1.500000e+00 : f32
    %196 = vector.broadcast %cst_66 : f32 to vector<2x256xf32>
    %197 = arith.mulf %196, %186 : vector<2x256xf32>
    %cst_67 = arith.constant 6.250000e-01 : f32
    %198 = vector.broadcast %cst_67 : f32 to vector<2x256xf32>
    %199 = arith.mulf %198, %191 : vector<2x256xf32>
    %200 = arith.addf %197, %199 : vector<2x256xf32>
    %cst_68 = arith.constant 2.16666675 : f32
    %201 = vector.broadcast %cst_68 : f32 to vector<2x256xf32>
    %202 = arith.mulf %201, %192 : vector<2x256xf32>
    %203 = arith.subf %200, %202 : vector<2x256xf32>
    %cst_69 = arith.constant 1.250000e+00 : f32
    %204 = vector.broadcast %cst_69 : f32 to vector<2x256xf32>
    %205 = arith.mulf %204, %193 : vector<2x256xf32>
    %206 = arith.addf %203, %205 : vector<2x256xf32>
    %cst_70 = arith.constant 0.208333328 : f32
    %207 = vector.broadcast %cst_70 : f32 to vector<2x256xf32>
    %208 = arith.mulf %207, %195 : vector<2x256xf32>
    %209 = arith.subf %206, %208 : vector<2x256xf32>
    %cst_71 = arith.constant 1.250000e+00 : f32
    %210 = vector.broadcast %cst_71 : f32 to vector<2x256xf32>
    %211 = arith.mulf %210, %186 : vector<2x256xf32>
    %cst_72 = arith.constant 1.500000e+00 : f32
    %212 = vector.broadcast %cst_72 : f32 to vector<2x256xf32>
    %213 = arith.addf %212, %211 : vector<2x256xf32>
    %cst_73 = arith.constant 6.500000e+00 : f32
    %214 = vector.broadcast %cst_73 : f32 to vector<2x256xf32>
    %215 = arith.mulf %214, %191 : vector<2x256xf32>
    %216 = arith.subf %213, %215 : vector<2x256xf32>
    %cst_74 = arith.constant 5.000000e+00 : f32
    %217 = vector.broadcast %cst_74 : f32 to vector<2x256xf32>
    %218 = arith.mulf %217, %192 : vector<2x256xf32>
    %219 = arith.addf %216, %218 : vector<2x256xf32>
    %cst_75 = arith.constant 1.250000e+00 : f32
    %220 = vector.broadcast %cst_75 : f32 to vector<2x256xf32>
    %221 = arith.mulf %220, %194 : vector<2x256xf32>
    %222 = arith.subf %219, %221 : vector<2x256xf32>
    %223 = math.absf %222 : vector<2x256xf32>
    %c255_i32_76 = arith.constant 255 : i32
    %224 = tpu.dynamic_rotate %209 by %c255_i32_76 dim 1 : vector<2x256xf32>, i32 -> vector<2x256xf32>
    %c255_i32_77 = arith.constant 255 : i32
    %225 = tpu.dynamic_rotate %186 by %c255_i32_77 dim 1 : vector<2x256xf32>, i32 -> vector<2x256xf32>
    %c255_i32_78 = arith.constant 255 : i32
    %226 = tpu.dynamic_rotate %223 by %c255_i32_78 dim 1 : vector<2x256xf32>, i32 -> vector<2x256xf32>
    %227 = arith.maximumf %223, %226 : vector<2x256xf32>
    %228 = arith.addf %209, %224 : vector<2x256xf32>
    %cst_79 = arith.constant 5.000000e-01 : f32
    %229 = vector.broadcast %cst_79 : f32 to vector<2x256xf32>
    %230 = arith.mulf %229, %228 : vector<2x256xf32>
    %cst_80 = arith.constant 5.000000e-01 : f32
    %231 = vector.broadcast %cst_80 : f32 to vector<2x256xf32>
    %232 = arith.mulf %231, %227 : vector<2x256xf32>
    %233 = arith.subf %225, %186 : vector<2x256xf32>
    %234 = arith.mulf %232, %233 : vector<2x256xf32>
    %235 = arith.subf %230, %234 : vector<2x256xf32>
    %c1_i32_81 = arith.constant 1 : i32
    %236 = tpu.dynamic_rotate %235 by %c1_i32_81 dim 1 : vector<2x256xf32>, i32 -> vector<2x256xf32>
    %237 = arith.subf %235, %236 : vector<2x256xf32>
    %238 = vector.broadcast %cst : f32 to vector<2x256xf32>
    %239 = arith.mulf %238, %237 : vector<2x256xf32>
    %240 = arith.subf %186, %239 : vector<2x256xf32>
    %c255_i32_82 = arith.constant 255 : i32
    %241 = tpu.dynamic_rotate %240 by %c255_i32_82 dim 1 : vector<2x256xf32>, i32 -> vector<2x256xf32>
    %c1_i32_83 = arith.constant 1 : i32
    %242 = tpu.dynamic_rotate %240 by %c1_i32_83 dim 1 : vector<2x256xf32>, i32 -> vector<2x256xf32>
    %243 = arith.select %5, %241, %240 : vector<2x256xi1>, vector<2x256xf32>
    %244 = arith.select %7, %242, %243 : vector<2x256xi1>, vector<2x256xf32>
    %cst_84 = arith.constant 0.000000e+00 : f32
    %245 = vector.broadcast %cst_84 : f32 to vector<2x256xf32>
    %246 = arith.select %9, %245, %244 : vector<2x256xi1>, vector<2x256xf32>
    %247 = arith.index_cast %c3_i32 : i32 to index
    %c0_85 = arith.constant 0 : index
    %c0_86 = arith.constant 0 : index
    %248 = vector.load %arg2[%247, %c0_85, %c0_86] : memref<8x2x256xf32, #tpu.memory_space<vmem>>, vector<1x2x256xf32>
    %249 = vector.shape_cast %248 : vector<1x2x256xf32> to vector<2x256xf32>
    %250 = vector.shape_cast %246 : vector<2x256xf32> to vector<1x2x256xf32>
    tpu.vector_store %arg2[%247, %c0_85, %c0_86], %250 {strides = array<i32>} : memref<8x2x256xf32, #tpu.memory_space<vmem>>, vector<1x2x256xf32>,
    %c4_i32 = arith.constant 4 : i32
    %251 = arith.mulf %246, %246 : vector<2x256xf32>
    %252 = arith.mulf %251, %246 : vector<2x256xf32>
    %253 = arith.mulf %251, %251 : vector<2x256xf32>
    %254 = arith.mulf %253, %246 : vector<2x256xf32>
    %255 = arith.mulf %253, %251 : vector<2x256xf32>
    %cst_87 = arith.constant 1.500000e+00 : f32
    %256 = vector.broadcast %cst_87 : f32 to vector<2x256xf32>
    %257 = arith.mulf %256, %246 : vector<2x256xf32>
    %cst_88 = arith.constant 6.250000e-01 : f32
    %258 = vector.broadcast %cst_88 : f32 to vector<2x256xf32>
    %259 = arith.mulf %258, %251 : vector<2x256xf32>
    %260 = arith.addf %257, %259 : vector<2x256xf32>
    %cst_89 = arith.constant 2.16666675 : f32
    %261 = vector.broadcast %cst_89 : f32 to vector<2x256xf32>
    %262 = arith.mulf %261, %252 : vector<2x256xf32>
    %263 = arith.subf %260, %262 : vector<2x256xf32>
    %cst_90 = arith.constant 1.250000e+00 : f32
    %264 = vector.broadcast %cst_90 : f32 to vector<2x256xf32>
    %265 = arith.mulf %264, %253 : vector<2x256xf32>
    %266 = arith.addf %263, %265 : vector<2x256xf32>
    %cst_91 = arith.constant 0.208333328 : f32
    %267 = vector.broadcast %cst_91 : f32 to vector<2x256xf32>
    %268 = arith.mulf %267, %255 : vector<2x256xf32>
    %269 = arith.subf %266, %268 : vector<2x256xf32>
    %cst_92 = arith.constant 1.250000e+00 : f32
    %270 = vector.broadcast %cst_92 : f32 to vector<2x256xf32>
    %271 = arith.mulf %270, %246 : vector<2x256xf32>
    %cst_93 = arith.constant 1.500000e+00 : f32
    %272 = vector.broadcast %cst_93 : f32 to vector<2x256xf32>
    %273 = arith.addf %272, %271 : vector<2x256xf32>
    %cst_94 = arith.constant 6.500000e+00 : f32
    %274 = vector.broadcast %cst_94 : f32 to vector<2x256xf32>
    %275 = arith.mulf %274, %251 : vector<2x256xf32>
    %276 = arith.subf %273, %275 : vector<2x256xf32>
    %cst_95 = arith.constant 5.000000e+00 : f32
    %277 = vector.broadcast %cst_95 : f32 to vector<2x256xf32>
    %278 = arith.mulf %277, %252 : vector<2x256xf32>
    %279 = arith.addf %276, %278 : vector<2x256xf32>
    %cst_96 = arith.constant 1.250000e+00 : f32
    %280 = vector.broadcast %cst_96 : f32 to vector<2x256xf32>
    %281 = arith.mulf %280, %254 : vector<2x256xf32>
    %282 = arith.subf %279, %281 : vector<2x256xf32>
    %283 = math.absf %282 : vector<2x256xf32>
    %c255_i32_97 = arith.constant 255 : i32
    %284 = tpu.dynamic_rotate %269 by %c255_i32_97 dim 1 : vector<2x256xf32>, i32 -> vector<2x256xf32>
    %c255_i32_98 = arith.constant 255 : i32
    %285 = tpu.dynamic_rotate %246 by %c255_i32_98 dim 1 : vector<2x256xf32>, i32 -> vector<2x256xf32>
    %c255_i32_99 = arith.constant 255 : i32
    %286 = tpu.dynamic_rotate %283 by %c255_i32_99 dim 1 : vector<2x256xf32>, i32 -> vector<2x256xf32>
    %287 = arith.maximumf %283, %286 : vector<2x256xf32>
    %288 = arith.addf %269, %284 : vector<2x256xf32>
    %cst_100 = arith.constant 5.000000e-01 : f32
    %289 = vector.broadcast %cst_100 : f32 to vector<2x256xf32>
    %290 = arith.mulf %289, %288 : vector<2x256xf32>
    %cst_101 = arith.constant 5.000000e-01 : f32
    %291 = vector.broadcast %cst_101 : f32 to vector<2x256xf32>
    %292 = arith.mulf %291, %287 : vector<2x256xf32>
    %293 = arith.subf %285, %246 : vector<2x256xf32>
    %294 = arith.mulf %292, %293 : vector<2x256xf32>
    %295 = arith.subf %290, %294 : vector<2x256xf32>
    %c1_i32_102 = arith.constant 1 : i32
    %296 = tpu.dynamic_rotate %295 by %c1_i32_102 dim 1 : vector<2x256xf32>, i32 -> vector<2x256xf32>
    %297 = arith.subf %295, %296 : vector<2x256xf32>
    %298 = vector.broadcast %cst : f32 to vector<2x256xf32>
    %299 = arith.mulf %298, %297 : vector<2x256xf32>
    %300 = arith.subf %246, %299 : vector<2x256xf32>
    %c255_i32_103 = arith.constant 255 : i32
    %301 = tpu.dynamic_rotate %300 by %c255_i32_103 dim 1 : vector<2x256xf32>, i32 -> vector<2x256xf32>
    %c1_i32_104 = arith.constant 1 : i32
    %302 = tpu.dynamic_rotate %300 by %c1_i32_104 dim 1 : vector<2x256xf32>, i32 -> vector<2x256xf32>
    %303 = arith.select %5, %301, %300 : vector<2x256xi1>, vector<2x256xf32>
    %304 = arith.select %7, %302, %303 : vector<2x256xi1>, vector<2x256xf32>
    %cst_105 = arith.constant 0.000000e+00 : f32
    %305 = vector.broadcast %cst_105 : f32 to vector<2x256xf32>
    %306 = arith.select %9, %305, %304 : vector<2x256xi1>, vector<2x256xf32>
    %307 = arith.index_cast %c4_i32 : i32 to index
    %c0_106 = arith.constant 0 : index
    %c0_107 = arith.constant 0 : index
    %308 = vector.load %arg2[%307, %c0_106, %c0_107] : memref<8x2x256xf32, #tpu.memory_space<vmem>>, vector<1x2x256xf32>
    %309 = vector.shape_cast %308 : vector<1x2x256xf32> to vector<2x256xf32>
    %310 = vector.shape_cast %306 : vector<2x256xf32> to vector<1x2x256xf32>
    tpu.vector_store %arg2[%307, %c0_106, %c0_107], %310 {strides = array<i32>} : memref<8x2x256xf32, #tpu.memory_space<vmem>>, vector<1x2x256xf32>,
    %c5_i32 = arith.constant 5 : i32
    %311 = arith.mulf %306, %306 : vector<2x256xf32>
    %312 = arith.mulf %311, %306 : vector<2x256xf32>
    %313 = arith.mulf %311, %311 : vector<2x256xf32>
    %314 = arith.mulf %313, %306 : vector<2x256xf32>
    %315 = arith.mulf %313, %311 : vector<2x256xf32>
    %cst_108 = arith.constant 1.500000e+00 : f32
    %316 = vector.broadcast %cst_108 : f32 to vector<2x256xf32>
    %317 = arith.mulf %316, %306 : vector<2x256xf32>
    %cst_109 = arith.constant 6.250000e-01 : f32
    %318 = vector.broadcast %cst_109 : f32 to vector<2x256xf32>
    %319 = arith.mulf %318, %311 : vector<2x256xf32>
    %320 = arith.addf %317, %319 : vector<2x256xf32>
    %cst_110 = arith.constant 2.16666675 : f32
    %321 = vector.broadcast %cst_110 : f32 to vector<2x256xf32>
    %322 = arith.mulf %321, %312 : vector<2x256xf32>
    %323 = arith.subf %320, %322 : vector<2x256xf32>
    %cst_111 = arith.constant 1.250000e+00 : f32
    %324 = vector.broadcast %cst_111 : f32 to vector<2x256xf32>
    %325 = arith.mulf %324, %313 : vector<2x256xf32>
    %326 = arith.addf %323, %325 : vector<2x256xf32>
    %cst_112 = arith.constant 0.208333328 : f32
    %327 = vector.broadcast %cst_112 : f32 to vector<2x256xf32>
    %328 = arith.mulf %327, %315 : vector<2x256xf32>
    %329 = arith.subf %326, %328 : vector<2x256xf32>
    %cst_113 = arith.constant 1.250000e+00 : f32
    %330 = vector.broadcast %cst_113 : f32 to vector<2x256xf32>
    %331 = arith.mulf %330, %306 : vector<2x256xf32>
    %cst_114 = arith.constant 1.500000e+00 : f32
    %332 = vector.broadcast %cst_114 : f32 to vector<2x256xf32>
    %333 = arith.addf %332, %331 : vector<2x256xf32>
    %cst_115 = arith.constant 6.500000e+00 : f32
    %334 = vector.broadcast %cst_115 : f32 to vector<2x256xf32>
    %335 = arith.mulf %334, %311 : vector<2x256xf32>
    %336 = arith.subf %333, %335 : vector<2x256xf32>
    %cst_116 = arith.constant 5.000000e+00 : f32
    %337 = vector.broadcast %cst_116 : f32 to vector<2x256xf32>
    %338 = arith.mulf %337, %312 : vector<2x256xf32>
    %339 = arith.addf %336, %338 : vector<2x256xf32>
    %cst_117 = arith.constant 1.250000e+00 : f32
    %340 = vector.broadcast %cst_117 : f32 to vector<2x256xf32>
    %341 = arith.mulf %340, %314 : vector<2x256xf32>
    %342 = arith.subf %339, %341 : vector<2x256xf32>
    %343 = math.absf %342 : vector<2x256xf32>
    %c255_i32_118 = arith.constant 255 : i32
    %344 = tpu.dynamic_rotate %329 by %c255_i32_118 dim 1 : vector<2x256xf32>, i32 -> vector<2x256xf32>
    %c255_i32_119 = arith.constant 255 : i32
    %345 = tpu.dynamic_rotate %306 by %c255_i32_119 dim 1 : vector<2x256xf32>, i32 -> vector<2x256xf32>
    %c255_i32_120 = arith.constant 255 : i32
    %346 = tpu.dynamic_rotate %343 by %c255_i32_120 dim 1 : vector<2x256xf32>, i32 -> vector<2x256xf32>
    %347 = arith.maximumf %343, %346 : vector<2x256xf32>
    %348 = arith.addf %329, %344 : vector<2x256xf32>
    %cst_121 = arith.constant 5.000000e-01 : f32
    %349 = vector.broadcast %cst_121 : f32 to vector<2x256xf32>
    %350 = arith.mulf %349, %348 : vector<2x256xf32>
    %cst_122 = arith.constant 5.000000e-01 : f32
    %351 = vector.broadcast %cst_122 : f32 to vector<2x256xf32>
    %352 = arith.mulf %351, %347 : vector<2x256xf32>
    %353 = arith.subf %345, %306 : vector<2x256xf32>
    %354 = arith.mulf %352, %353 : vector<2x256xf32>
    %355 = arith.subf %350, %354 : vector<2x256xf32>
    %c1_i32_123 = arith.constant 1 : i32
    %356 = tpu.dynamic_rotate %355 by %c1_i32_123 dim 1 : vector<2x256xf32>, i32 -> vector<2x256xf32>
    %357 = arith.subf %355, %356 : vector<2x256xf32>
    %358 = vector.broadcast %cst : f32 to vector<2x256xf32>
    %359 = arith.mulf %358, %357 : vector<2x256xf32>
    %360 = arith.subf %306, %359 : vector<2x256xf32>
    %c255_i32_124 = arith.constant 255 : i32
    %361 = tpu.dynamic_rotate %360 by %c255_i32_124 dim 1 : vector<2x256xf32>, i32 -> vector<2x256xf32>
    %c1_i32_125 = arith.constant 1 : i32
    %362 = tpu.dynamic_rotate %360 by %c1_i32_125 dim 1 : vector<2x256xf32>, i32 -> vector<2x256xf32>
    %363 = arith.select %5, %361, %360 : vector<2x256xi1>, vector<2x256xf32>
    %364 = arith.select %7, %362, %363 : vector<2x256xi1>, vector<2x256xf32>
    %cst_126 = arith.constant 0.000000e+00 : f32
    %365 = vector.broadcast %cst_126 : f32 to vector<2x256xf32>
    %366 = arith.select %9, %365, %364 : vector<2x256xi1>, vector<2x256xf32>
    %367 = arith.index_cast %c5_i32 : i32 to index
    %c0_127 = arith.constant 0 : index
    %c0_128 = arith.constant 0 : index
    %368 = vector.load %arg2[%367, %c0_127, %c0_128] : memref<8x2x256xf32, #tpu.memory_space<vmem>>, vector<1x2x256xf32>
    %369 = vector.shape_cast %368 : vector<1x2x256xf32> to vector<2x256xf32>
    %370 = vector.shape_cast %366 : vector<2x256xf32> to vector<1x2x256xf32>
    tpu.vector_store %arg2[%367, %c0_127, %c0_128], %370 {strides = array<i32>} : memref<8x2x256xf32, #tpu.memory_space<vmem>>, vector<1x2x256xf32>,
    %c6_i32 = arith.constant 6 : i32
    %371 = arith.mulf %366, %366 : vector<2x256xf32>
    %372 = arith.mulf %371, %366 : vector<2x256xf32>
    %373 = arith.mulf %371, %371 : vector<2x256xf32>
    %374 = arith.mulf %373, %366 : vector<2x256xf32>
    %375 = arith.mulf %373, %371 : vector<2x256xf32>
    %cst_129 = arith.constant 1.500000e+00 : f32
    %376 = vector.broadcast %cst_129 : f32 to vector<2x256xf32>
    %377 = arith.mulf %376, %366 : vector<2x256xf32>
    %cst_130 = arith.constant 6.250000e-01 : f32
    %378 = vector.broadcast %cst_130 : f32 to vector<2x256xf32>
    %379 = arith.mulf %378, %371 : vector<2x256xf32>
    %380 = arith.addf %377, %379 : vector<2x256xf32>
    %cst_131 = arith.constant 2.16666675 : f32
    %381 = vector.broadcast %cst_131 : f32 to vector<2x256xf32>
    %382 = arith.mulf %381, %372 : vector<2x256xf32>
    %383 = arith.subf %380, %382 : vector<2x256xf32>
    %cst_132 = arith.constant 1.250000e+00 : f32
    %384 = vector.broadcast %cst_132 : f32 to vector<2x256xf32>
    %385 = arith.mulf %384, %373 : vector<2x256xf32>
    %386 = arith.addf %383, %385 : vector<2x256xf32>
    %cst_133 = arith.constant 0.208333328 : f32
    %387 = vector.broadcast %cst_133 : f32 to vector<2x256xf32>
    %388 = arith.mulf %387, %375 : vector<2x256xf32>
    %389 = arith.subf %386, %388 : vector<2x256xf32>
    %cst_134 = arith.constant 1.250000e+00 : f32
    %390 = vector.broadcast %cst_134 : f32 to vector<2x256xf32>
    %391 = arith.mulf %390, %366 : vector<2x256xf32>
    %cst_135 = arith.constant 1.500000e+00 : f32
    %392 = vector.broadcast %cst_135 : f32 to vector<2x256xf32>
    %393 = arith.addf %392, %391 : vector<2x256xf32>
    %cst_136 = arith.constant 6.500000e+00 : f32
    %394 = vector.broadcast %cst_136 : f32 to vector<2x256xf32>
    %395 = arith.mulf %394, %371 : vector<2x256xf32>
    %396 = arith.subf %393, %395 : vector<2x256xf32>
    %cst_137 = arith.constant 5.000000e+00 : f32
    %397 = vector.broadcast %cst_137 : f32 to vector<2x256xf32>
    %398 = arith.mulf %397, %372 : vector<2x256xf32>
    %399 = arith.addf %396, %398 : vector<2x256xf32>
    %cst_138 = arith.constant 1.250000e+00 : f32
    %400 = vector.broadcast %cst_138 : f32 to vector<2x256xf32>
    %401 = arith.mulf %400, %374 : vector<2x256xf32>
    %402 = arith.subf %399, %401 : vector<2x256xf32>
    %403 = math.absf %402 : vector<2x256xf32>
    %c255_i32_139 = arith.constant 255 : i32
    %404 = tpu.dynamic_rotate %389 by %c255_i32_139 dim 1 : vector<2x256xf32>, i32 -> vector<2x256xf32>
    %c255_i32_140 = arith.constant 255 : i32
    %405 = tpu.dynamic_rotate %366 by %c255_i32_140 dim 1 : vector<2x256xf32>, i32 -> vector<2x256xf32>
    %c255_i32_141 = arith.constant 255 : i32
    %406 = tpu.dynamic_rotate %403 by %c255_i32_141 dim 1 : vector<2x256xf32>, i32 -> vector<2x256xf32>
    %407 = arith.maximumf %403, %406 : vector<2x256xf32>
    %408 = arith.addf %389, %404 : vector<2x256xf32>
    %cst_142 = arith.constant 5.000000e-01 : f32
    %409 = vector.broadcast %cst_142 : f32 to vector<2x256xf32>
    %410 = arith.mulf %409, %408 : vector<2x256xf32>
    %cst_143 = arith.constant 5.000000e-01 : f32
    %411 = vector.broadcast %cst_143 : f32 to vector<2x256xf32>
    %412 = arith.mulf %411, %407 : vector<2x256xf32>
    %413 = arith.subf %405, %366 : vector<2x256xf32>
    %414 = arith.mulf %412, %413 : vector<2x256xf32>
    %415 = arith.subf %410, %414 : vector<2x256xf32>
    %c1_i32_144 = arith.constant 1 : i32
    %416 = tpu.dynamic_rotate %415 by %c1_i32_144 dim 1 : vector<2x256xf32>, i32 -> vector<2x256xf32>
    %417 = arith.subf %415, %416 : vector<2x256xf32>
    %418 = vector.broadcast %cst : f32 to vector<2x256xf32>
    %419 = arith.mulf %418, %417 : vector<2x256xf32>
    %420 = arith.subf %366, %419 : vector<2x256xf32>
    %c255_i32_145 = arith.constant 255 : i32
    %421 = tpu.dynamic_rotate %420 by %c255_i32_145 dim 1 : vector<2x256xf32>, i32 -> vector<2x256xf32>
    %c1_i32_146 = arith.constant 1 : i32
    %422 = tpu.dynamic_rotate %420 by %c1_i32_146 dim 1 : vector<2x256xf32>, i32 -> vector<2x256xf32>
    %423 = arith.select %5, %421, %420 : vector<2x256xi1>, vector<2x256xf32>
    %424 = arith.select %7, %422, %423 : vector<2x256xi1>, vector<2x256xf32>
    %cst_147 = arith.constant 0.000000e+00 : f32
    %425 = vector.broadcast %cst_147 : f32 to vector<2x256xf32>
    %426 = arith.select %9, %425, %424 : vector<2x256xi1>, vector<2x256xf32>
    %427 = arith.index_cast %c6_i32 : i32 to index
    %c0_148 = arith.constant 0 : index
    %c0_149 = arith.constant 0 : index
    %428 = vector.load %arg2[%427, %c0_148, %c0_149] : memref<8x2x256xf32, #tpu.memory_space<vmem>>, vector<1x2x256xf32>
    %429 = vector.shape_cast %428 : vector<1x2x256xf32> to vector<2x256xf32>
    %430 = vector.shape_cast %426 : vector<2x256xf32> to vector<1x2x256xf32>
    tpu.vector_store %arg2[%427, %c0_148, %c0_149], %430 {strides = array<i32>} : memref<8x2x256xf32, #tpu.memory_space<vmem>>, vector<1x2x256xf32>,
    %c7_i32 = arith.constant 7 : i32
    %431 = arith.mulf %426, %426 : vector<2x256xf32>
    %432 = arith.mulf %431, %426 : vector<2x256xf32>
    %433 = arith.mulf %431, %431 : vector<2x256xf32>
    %434 = arith.mulf %433, %426 : vector<2x256xf32>
    %435 = arith.mulf %433, %431 : vector<2x256xf32>
    %cst_150 = arith.constant 1.500000e+00 : f32
    %436 = vector.broadcast %cst_150 : f32 to vector<2x256xf32>
    %437 = arith.mulf %436, %426 : vector<2x256xf32>
    %cst_151 = arith.constant 6.250000e-01 : f32
    %438 = vector.broadcast %cst_151 : f32 to vector<2x256xf32>
    %439 = arith.mulf %438, %431 : vector<2x256xf32>
    %440 = arith.addf %437, %439 : vector<2x256xf32>
    %cst_152 = arith.constant 2.16666675 : f32
    %441 = vector.broadcast %cst_152 : f32 to vector<2x256xf32>
    %442 = arith.mulf %441, %432 : vector<2x256xf32>
    %443 = arith.subf %440, %442 : vector<2x256xf32>
    %cst_153 = arith.constant 1.250000e+00 : f32
    %444 = vector.broadcast %cst_153 : f32 to vector<2x256xf32>
    %445 = arith.mulf %444, %433 : vector<2x256xf32>
    %446 = arith.addf %443, %445 : vector<2x256xf32>
    %cst_154 = arith.constant 0.208333328 : f32
    %447 = vector.broadcast %cst_154 : f32 to vector<2x256xf32>
    %448 = arith.mulf %447, %435 : vector<2x256xf32>
    %449 = arith.subf %446, %448 : vector<2x256xf32>
    %cst_155 = arith.constant 1.250000e+00 : f32
    %450 = vector.broadcast %cst_155 : f32 to vector<2x256xf32>
    %451 = arith.mulf %450, %426 : vector<2x256xf32>
    %cst_156 = arith.constant 1.500000e+00 : f32
    %452 = vector.broadcast %cst_156 : f32 to vector<2x256xf32>
    %453 = arith.addf %452, %451 : vector<2x256xf32>
    %cst_157 = arith.constant 6.500000e+00 : f32
    %454 = vector.broadcast %cst_157 : f32 to vector<2x256xf32>
    %455 = arith.mulf %454, %431 : vector<2x256xf32>
    %456 = arith.subf %453, %455 : vector<2x256xf32>
    %cst_158 = arith.constant 5.000000e+00 : f32
    %457 = vector.broadcast %cst_158 : f32 to vector<2x256xf32>
    %458 = arith.mulf %457, %432 : vector<2x256xf32>
    %459 = arith.addf %456, %458 : vector<2x256xf32>
    %cst_159 = arith.constant 1.250000e+00 : f32
    %460 = vector.broadcast %cst_159 : f32 to vector<2x256xf32>
    %461 = arith.mulf %460, %434 : vector<2x256xf32>
    %462 = arith.subf %459, %461 : vector<2x256xf32>
    %463 = math.absf %462 : vector<2x256xf32>
    %c255_i32_160 = arith.constant 255 : i32
    %464 = tpu.dynamic_rotate %449 by %c255_i32_160 dim 1 : vector<2x256xf32>, i32 -> vector<2x256xf32>
    %c255_i32_161 = arith.constant 255 : i32
    %465 = tpu.dynamic_rotate %426 by %c255_i32_161 dim 1 : vector<2x256xf32>, i32 -> vector<2x256xf32>
    %c255_i32_162 = arith.constant 255 : i32
    %466 = tpu.dynamic_rotate %463 by %c255_i32_162 dim 1 : vector<2x256xf32>, i32 -> vector<2x256xf32>
    %467 = arith.maximumf %463, %466 : vector<2x256xf32>
    %468 = arith.addf %449, %464 : vector<2x256xf32>
    %cst_163 = arith.constant 5.000000e-01 : f32
    %469 = vector.broadcast %cst_163 : f32 to vector<2x256xf32>
    %470 = arith.mulf %469, %468 : vector<2x256xf32>
    %cst_164 = arith.constant 5.000000e-01 : f32
    %471 = vector.broadcast %cst_164 : f32 to vector<2x256xf32>
    %472 = arith.mulf %471, %467 : vector<2x256xf32>
    %473 = arith.subf %465, %426 : vector<2x256xf32>
    %474 = arith.mulf %472, %473 : vector<2x256xf32>
    %475 = arith.subf %470, %474 : vector<2x256xf32>
    %c1_i32_165 = arith.constant 1 : i32
    %476 = tpu.dynamic_rotate %475 by %c1_i32_165 dim 1 : vector<2x256xf32>, i32 -> vector<2x256xf32>
    %477 = arith.subf %475, %476 : vector<2x256xf32>
    %478 = vector.broadcast %cst : f32 to vector<2x256xf32>
    %479 = arith.mulf %478, %477 : vector<2x256xf32>
    %480 = arith.subf %426, %479 : vector<2x256xf32>
    %c255_i32_166 = arith.constant 255 : i32
    %481 = tpu.dynamic_rotate %480 by %c255_i32_166 dim 1 : vector<2x256xf32>, i32 -> vector<2x256xf32>
    %c1_i32_167 = arith.constant 1 : i32
    %482 = tpu.dynamic_rotate %480 by %c1_i32_167 dim 1 : vector<2x256xf32>, i32 -> vector<2x256xf32>
    %483 = arith.select %5, %481, %480 : vector<2x256xi1>, vector<2x256xf32>
    %484 = arith.select %7, %482, %483 : vector<2x256xi1>, vector<2x256xf32>
    %cst_168 = arith.constant 0.000000e+00 : f32
    %485 = vector.broadcast %cst_168 : f32 to vector<2x256xf32>
    %486 = arith.select %9, %485, %484 : vector<2x256xi1>, vector<2x256xf32>
    %487 = arith.index_cast %c7_i32 : i32 to index
    %c0_169 = arith.constant 0 : index
    %c0_170 = arith.constant 0 : index
    %488 = vector.load %arg2[%487, %c0_169, %c0_170] : memref<8x2x256xf32, #tpu.memory_space<vmem>>, vector<1x2x256xf32>
    %489 = vector.shape_cast %488 : vector<1x2x256xf32> to vector<2x256xf32>
    %490 = vector.shape_cast %486 : vector<2x256xf32> to vector<1x2x256xf32>
    tpu.vector_store %arg2[%487, %c0_169, %c0_170], %490 {strides = array<i32>} : memref<8x2x256xf32, #tpu.memory_space<vmem>>, vector<1x2x256xf32>,
    %c8_i32 = arith.constant 8 : i32
    %c0_171 = arith.constant 0 : index
    %c0_172 = arith.constant 0 : index
    %491 = vector.load %arg3[%c0_171, %c0_172] : memref<2x256xf32, #tpu.memory_space<vmem>>, vector<2x256xf32>
    tpu.vector_store %arg3[%c0_171, %c0_172], %486 {strides = array<i32>} : memref<2x256xf32, #tpu.memory_space<vmem>>, vector<2x256xf32>,
    return
  }
  func.func @transform_0(%arg0: i32) -> (i32, i32) {
    %c0_i32 = arith.constant 0 : i32
    %c0_i32_0 = arith.constant 0 : i32
    %c0_i32_1 = arith.constant 0 : i32
    return %c0_i32, %c0_i32_0 : i32, i32
  }
  func.func @transform_1(%arg0: i32) -> (i32, i32, i32) {
    %c0_i32 = arith.constant 0 : i32
    %c0_i32_0 = arith.constant 0 : i32
    %c0_i32_1 = arith.constant 0 : i32
    return %arg0, %c0_i32, %c0_i32_0 : i32, i32, i32
  }
}

</mosaic_0001>

<llo_original>
// kernel: tpu_custom_call.1
$region0: #{tpu_custom_call.1}
  #allocation0 [shape = 'u32[]', space=smem, size = 0x4, offset = 0x4, fixed_abs, tag = 'smem constant byte address 0x4 - core index']
  #allocation1 [shape = 'u32[144,128]{1,0:T(1,128)}', space=vmem, size = 0x12000, scoped, tag = 'internal scratch']
  #allocation2 [shape = 'f32[2,256]{1,0:T(2,128)}', space=vmem, size = 0x800, scoped, tag = 'scratch operand']
  %s0 = inlined_call_operand.hbm [shape: f32[2,256], index: 0, kind: input, shape index: {}]
  %s1 = inlined_call_operand.hbm [shape: f32[24,2,256], index: 1, kind: output, shape index: {}]
  %s2 = sld [smem:[#allocation0]]
  $region45: #{tpu_custom_call.1} parent=0
    _
  %s4 = ssub.s32 1, %s2
  %s5 = scalar_select 0, %s4, %s2
  $region1: #{tpu_custom_call.1} parent=0
    #allocation3 [shape = 'u8[2048]{0}', space=vmem, size = 0x800, scoped, tag = 'input window, operand 0, single buffered']
    #allocation4 [shape = 's32[2]{0}', space=sflag, size = 0x8, scoped, tag = 'scoped memory for tpu_custom_call.1']
    #allocation5 [shape = 's32[2]{0}', space=sflag, size = 0x8, scoped, tag = 'scoped memory for tpu_custom_call.1']
    #allocation6 [shape = 'u8[32768]{0}', space=vmem, size = 0x8000, scoped, tag = 'output window, operand 0']
    %6 = vsyncpa [#allocation4], 0
    %7 = vsyncpa [#allocation5], 0
    %s8 = scalar_lea.sflag [#allocation5], 1
    %9 = vsyncpa %s8, 0
    loop: start=0, step=1, limit=5
    $region2: #{tpu_custom_call.1} parent=1 // loop_pre_header
      _
    $region3: #{tpu_custom_call.1} parent=1 // loop_header
      %s11 = sphi 0, %s15
      %p12 = scmp.ge.s32.totalorder %s11, 5
      %s19 = sphi 0, %s19
      %s21 = sphi 0, %s19
      %s22 = sphi 0, %s21
      %s36 = sphi 0, %s22
      %s42 = sphi 0, %s44
      %s45 = sphi 0, %s42
      %s46 = sphi 0, %s45
      %s62 = sphi 0, %s46
    $region4: #{tpu_custom_call.1} parent=1 // loop_header_branch
      %14 = sbr.rel (%p12) target = $region8
    $region5: #{tpu_custom_call.1} parent=1 // loop_body
      %s16 = ssub.s32 %s11, 1
      %s17 = ssub.s32 %s11, 2
      %s18 = sadd.s32 %s11, 1
      %s20 = sadd.s32 %s19, 1
      %p23 = scmp.eq.s32.totalorder %s11, 2
      %p24 = scmp.ne.s32.totalorder %s19, %s21
      %p25 = scmp.eq.s32.totalorder %s11, 0
      %p26 = por %p24, %p25
      %p27 = scmp.ne.s32.totalorder %s19, %s21
      %p28 = scmp.eq.s32.totalorder %s16, 2
      %p29 = por %p27, %p28
      %p30 = scmp.ne.s32.totalorder %s21, %s22
      %p31 = scmp.eq.s32.totalorder %s16, 0
      %p32 = por %p30, %p31
      %p33 = scmp.ne.s32.totalorder %s21, %s22
      %p34 = scmp.eq.s32.totalorder %s17, 2
      %p35 = por %p33, %p34
      %p37 = scmp.ne.s32.totalorder %s22, %s36
      %p38 = scmp.eq.s32.totalorder %s17, 0
      %p39 = por %p37, %p38
      %s40 = ssub.s32 %s11, %s18
      %p41 = scmp.eq.s32.totalorder %s40, 0
      %s43 = sadd.s32 %s42, 1
      %s44 = scalar_select %p41, %s42, %s43
      %p47 = pneg %p41
      %p48 = scmp.eq.s32.totalorder %s11, 2
      %p49 = por %p47, %p48
      %p50 = scmp.ne.s32.totalorder %s42, %s45
      %p51 = scmp.eq.s32.totalorder %s11, 0
      %p52 = por %p50, %p51
      %p53 = scmp.ne.s32.totalorder %s42, %s45
      %p54 = scmp.eq.s32.totalorder %s16, 2
      %p55 = por %p53, %p54
      %p56 = scmp.ne.s32.totalorder %s45, %s46
      %p57 = scmp.eq.s32.totalorder %s16, 0
      %p58 = por %p56, %p57
      %p59 = scmp.ne.s32.totalorder %s45, %s46
      %p60 = scmp.eq.s32.totalorder %s17, 2
      %p61 = por %p59, %p60
      %p63 = scmp.ne.s32.totalorder %s46, %s62
      %p64 = scmp.eq.s32.totalorder %s17, 0
      %p65 = por %p63, %p64
      %p66 = scmp.le.s32.totalorder 1, %s11
      %p67 = scmp.lt.s32.totalorder %s11, 4
      %p68 = pnand %p66, %p67
      %p69 = pneg %p68
      // Predicated region
      $region9: #{tpu_custom_call.1} parent=5 // pred_check
        _
      $region10: #{tpu_custom_call.1} parent=5 // pred_check_branch
        %71 = sbr.rel (%p68) target = $region12
      $region11: #{tpu_custom_call.1} parent=5 // pred_region
        %s72 = ssub.s32 %s11, 1
        // Predicated region
        $region13: #{tpu_custom_call.1} parent=11 // pred_check
          %p73 = pneg %p32
        $region14: #{tpu_custom_call.1} parent=11 // pred_check_branch
          %75 = sbr.rel (%p73) target = $region16
        $region15: #{tpu_custom_call.1} parent=11 // pred_region
          %s77 = ssub.s32 64, 64
          %78 = vsyncadd [#allocation4], %s77
          %s80 = sshll.u32 [#allocation3], 4
          %s81 = int_to_ptr.vmem [resolvable:$true] %s80
          %83 = dma.hbm_to_vmem [thread:$0]  %s0, 64, %s81, [#allocation4]
        $region16: #{tpu_custom_call.1} parent=11 // pred_fallthru
          _
      $region12: #{tpu_custom_call.1} parent=5 // pred_fallthru
        _
      %p84 = scmp.lt.s32.totalorder %s11, 3
      // Predicated region
      $region17: #{tpu_custom_call.1} parent=5 // pred_check
        %p85 = pneg %p84
      $region18: #{tpu_custom_call.1} parent=5 // pred_check_branch
        %87 = sbr.rel (%p85) target = $region20
      $region19: #{tpu_custom_call.1} parent=5 // pred_region
        _
      $region20: #{tpu_custom_call.1} parent=5 // pred_fallthru
        _
      %p88 = scmp.le.s32.totalorder 1, %s11
      %p89 = scmp.lt.s32.totalorder %s11, 4
      %p90 = pnand %p88, %p89
      %p91 = pneg %p90
      // Predicated region
      $region21: #{tpu_custom_call.1} parent=5 // pred_check
        _
      $region22: #{tpu_custom_call.1} parent=5 // pred_check_branch
        %93 = sbr.rel (%p90) target = $region24
      $region23: #{tpu_custom_call.1} parent=5 // pred_region
        %s94 = ssub.s32 %s11, 1
        // Predicated region
        $region25: #{tpu_custom_call.1} parent=23 // pred_check
          %p95 = pneg %p32
        $region26: #{tpu_custom_call.1} parent=23 // pred_check_branch
          %97 = sbr.rel (%p95) target = $region28
        $region27: #{tpu_custom_call.1} parent=23 // pred_region
          %98 = dma.done [#allocation4], 64
        $region28: #{tpu_custom_call.1} parent=23 // pred_fallthru
          _
        %p99 = pneg %p32
        %p100 = pneg %p29
        %p101 = pneg %p58
        %p102 = pneg %p55
        %s103 = sand.u32 %s45, 1
        %s104 = scalar_lea.sflag [#allocation5], %s103
        %s105 = sand.u32 %s45, 1
        %s106 = smul.addr %s105, 32
        %s107 = scalar_lea.vmem [#allocation6], %s106
        %s108 = smul.u32 8, %s16
        %p109 = scmp.eq.s32.totalorder %s16, 0
        // Predicated region
        $region29: #{tpu_custom_call.1} parent=23 // pred_check
          %p110 = pneg %p109
        $region30: #{tpu_custom_call.1} parent=23 // pred_check_branch
          %112 = sbr.rel (%p110) target = $region32
        $region31: #{tpu_custom_call.1} parent=23 // pred_region
          %v113 = vld [vmem:[#allocation3] sm:$0xf]
          %114 = vst [vmem:[#allocation2] sm:$0xf] %v113
        $region32: #{tpu_custom_call.1} parent=23 // pred_fallthru
          _
        %v115 = vlaneseq
        %v116 = vand.u32 %v115, 127
        %v117 = vadd.s32 %v116, 128
        %vm118 = vcmp.eq.s32.totalorder %v116, 0
        %vm119 = vcmp.eq.s32.totalorder %v117, 0
        %vm120 = vcmp.eq.s32.totalorder %v116, 199
        %vm121 = vcmp.eq.s32.totalorder %v117, 199
        %vm122 = vcmp.ge.s32.totalorder %v116, 200
        %vm123 = vcmp.ge.s32.totalorder %v117, 200
        %v124 = vld [vmem:[#allocation2] sm:$0xf]
        %v125 = vmul.f32 %v124, %v124
        %v126 = vmul.f32 %v125, %v124
        %v127 = vmul.f32 %v125, %v125
        %v128 = vmul.f32 %v127, %v124
        %v129 = vmul.f32 %v127, %v125
        %v130 = vmul.f32 %v124, 1.5
        %v131 = vmul.f32 %v125, 0.625
        %v132 = vadd.f32 %v130, %v131
        %v133 = vmul.f32 %v126, 2.1666667
        %v134 = vsub.f32 %v132, %v133
        %v135 = vmul.f32 %v127, 1.25
        %v136 = vadd.f32 %v134, %v135
        %v137 = vmul.f32 %v129, 0.20833333
        %v138 = vsub.f32 %v136, %v137
        %v139 = vmul.f32 %v124, 1.25
        %v140 = vadd.f32 %v139, 1.5
        %v141 = vmul.f32 %v125, 6.5
        %v142 = vsub.f32 %v140, %v141
        %v143 = vmul.f32 %v126, 5.0
        %v144 = vadd.f32 %v142, %v143
        %v145 = vmul.f32 %v128, 1.25
        %v146 = vsub.f32 %v144, %v145
        %v147 = vand.u32 2147483647, %v146
        %v150 = vunpack.c.l.s4 1983009808
        %v151 = vunpack.c.0.s8 %v150
        %v152 = vlaneseq
        %v153 = vshrl.u32 %v152, 7
        %v154 = vsub.s32 %v151, %v153
        %v155 = vrot.slane %v138, %v154
        %v156 = vcombine.high %v155, %v155
        %159 = vrot.lane.b32.xlu0 %v155, 127
        %v160 = vpop.permute.xlu0 %159
        %161 = vrot.lane.b32.xlu0 %v156, 127
        %v162 = vpop.permute.xlu0 %161
        %vm163 = vcmp.lt.s32.totalorder %v116, 127
        %v164 = vsel %vm163, %v160, %v162
        %v165 = vsel %vm163, %v162, %v160
        %v168 = vunpack.c.l.s4 1983009808
        %v169 = vunpack.c.0.s8 %v168
        %v170 = vlaneseq
        %v171 = vshrl.u32 %v170, 7
        %v172 = vsub.s32 %v169, %v171
        %v173 = vrot.slane %v124, %v172
        %v174 = vcombine.high %v173, %v173
        %177 = vrot.lane.b32.xlu0 %v173, 127
        %v178 = vpop.permute.xlu0 %177
        %179 = vrot.lane.b32.xlu0 %v174, 127
        %v180 = vpop.permute.xlu0 %179
        %v181 = vsel %vm163, %v178, %v180
        %v182 = vsel %vm163, %v180, %v178
        %v185 = vunpack.c.l.s4 1983009808
        %v186 = vunpack.c.0.s8 %v185
        %v187 = vlaneseq
        %v188 = vshrl.u32 %v187, 7
        %v189 = vsub.s32 %v186, %v188
        %v190 = vrot.slane %v147, %v189
        %v191 = vcombine.high %v190, %v190
        %194 = vrot.lane.b32.xlu0 %v190, 127
        %v195 = vpop.permute.xlu0 %194
        %196 = vrot.lane.b32.xlu0 %v191, 127
        %v197 = vpop.permute.xlu0 %196
        %v198 = vsel %vm163, %v195, %v197
        %v199 = vsel %vm163, %v197, %v195
        %v202 = vcombine.low %v198, %v199
        %v204 = vunpack.c.l.s4 1983009808
        %v205 = vunpack.c.0.s8 %v204
        %v206 = vlaneseq
        %v207 = vshrl.u32 %v206, 7
        %v208 = vsub.s32 %v205, %v207
        %v209 = vrot.slane %v202, %v208
        %v211 = vmax.f32 %v147, %v209
        %v214 = vcombine.low %v164, %v165
        %v216 = vunpack.c.l.s4 1983009808
        %v217 = vunpack.c.0.s8 %v216
        %v218 = vlaneseq
        %v219 = vshrl.u32 %v218, 7
        %v220 = vsub.s32 %v217, %v219
        %v221 = vrot.slane %v214, %v220
        %v223 = vadd.f32 %v138, %v221
        %v224 = vmul.f32 %v223, 0.5
        %v225 = vmul.f32 %v211, 0.5
        %v226 = vsub.f32 %v181, %v173
        %v227 = vsub.f32 %v182, %v174
        %v230 = vcombine.low %v226, %v227
        %v232 = vunpack.c.l.s4 1983009808
        %v233 = vunpack.c.0.s8 %v232
        %v234 = vlaneseq
        %v235 = vshrl.u32 %v234, 7
        %v236 = vsub.s32 %v233, %v235
        %v237 = vrot.slane %v230, %v236
        %v239 = vmul.f32 %v225, %v237
        %v240 = vsub.f32 %v224, %v239
        %v243 = vunpack.c.l.s4 1983009808
        %v244 = vunpack.c.0.s8 %v243
        %v245 = vlaneseq
        %v246 = vshrl.u32 %v245, 7
        %v247 = vsub.s32 %v244, %v246
        %v248 = vrot.slane %v240, %v247
        %v249 = vcombine.high %v248, %v248
        %252 = vrot.lane.b32.xlu0 %v248, 1
        %v253 = vpop.permute.xlu0 %252
        %254 = vrot.lane.b32.xlu0 %v249, 1
        %v255 = vpop.permute.xlu0 %254
        %vm256 = vcmp.lt.s32.totalorder %v116, 1
        %v257 = vsel %vm256, %v253, %v255
        %v258 = vsel %vm256, %v255, %v253
        %v261 = vcombine.low %v258, %v257
        %v263 = vunpack.c.l.s4 1983009808
        %v264 = vunpack.c.0.s8 %v263
        %v265 = vlaneseq
        %v266 = vshrl.u32 %v265, 7
        %v267 = vsub.s32 %v264, %v266
        %v268 = vrot.slane %v261, %v267
        %v270 = vsub.f32 %v240, %v268
        %v271 = vmul.f32 %v270, 0.4
        %v272 = vsub.f32 %v124, %v271
        %v275 = vunpack.c.l.s4 1983009808
        %v276 = vunpack.c.0.s8 %v275
        %v277 = vlaneseq
        %v278 = vshrl.u32 %v277, 7
        %v279 = vsub.s32 %v276, %v278
        %v280 = vrot.slane %v272, %v279
        %v281 = vcombine.high %v280, %v280
        %284 = vrot.lane.b32.xlu0 %v280, 127
        %v285 = vpop.permute.xlu0 %284
        %286 = vrot.lane.b32.xlu0 %v281, 127
        %v287 = vpop.permute.xlu0 %286
        %v288 = vsel %vm163, %v285, %v287
        %v289 = vsel %vm163, %v287, %v285
        %290 = vrot.lane.b32.xlu0 %v280, 1
        %v291 = vpop.permute.xlu0 %290
        %292 = vrot.lane.b32.xlu0 %v281, 1
        %v293 = vpop.permute.xlu0 %292
        %v294 = vsel %vm256, %v291, %v293
        %v295 = vsel %vm256, %v293, %v291
        %v296 = vsel %vm118, %v288, %v280
        %v297 = vsel %vm119, %v289, %v281
        %v298 = vsel %vm120, %v295, %v296
        %v299 = vsel %vm121, %v294, %v297
        %v300 = vsel %vm122, 0.0, %v298
        %v301 = vsel %vm123, 0.0, %v299
        %v304 = vcombine.low %v300, %v301
        %v306 = vunpack.c.l.s4 1983009808
        %v307 = vunpack.c.0.s8 %v306
        %v308 = vlaneseq
        %v309 = vshrl.u32 %v308, 7
        %v310 = vsub.s32 %v307, %v309
        %v311 = vrot.slane %v304, %v310
        %313 = vst [vmem:[%s107] sm:$0xf] %v311
        %v314 = vmul.f32 %v300, %v300
        %v315 = vmul.f32 %v301, %v301
        %v316 = vmul.f32 %v314, %v300
        %v317 = vmul.f32 %v315, %v301
        %v318 = vmul.f32 %v314, %v314
        %v319 = vmul.f32 %v315, %v315
        %v320 = vmul.f32 %v318, %v300
        %v321 = vmul.f32 %v319, %v301
        %v322 = vmul.f32 %v318, %v314
        %v323 = vmul.f32 %v319, %v315
        %v324 = vmul.f32 %v300, 1.5
        %v325 = vmul.f32 %v301, 1.5
        %v326 = vmul.f32 %v314, 0.625
        %v327 = vmul.f32 %v315, 0.625
        %v328 = vadd.f32 %v324, %v326
        %v329 = vadd.f32 %v325, %v327
        %v330 = vmul.f32 %v316, 2.1666667
        %v331 = vmul.f32 %v317, 2.1666667
        %v332 = vsub.f32 %v328, %v330
        %v333 = vsub.f32 %v329, %v331
        %v334 = vmul.f32 %v318, 1.25
        %v335 = vmul.f32 %v319, 1.25
        %v336 = vadd.f32 %v332, %v334
        %v337 = vadd.f32 %v333, %v335
        %v338 = vmul.f32 %v322, 0.20833333
        %v339 = vmul.f32 %v323, 0.20833333
        %v340 = vsub.f32 %v336, %v338
        %v341 = vsub.f32 %v337, %v339
        %v342 = vmul.f32 %v300, 1.25
        %v343 = vmul.f32 %v301, 1.25
        %v344 = vadd.f32 %v342, 1.5
        %v345 = vadd.f32 %v343, 1.5
        %v346 = vmul.f32 %v314, 6.5
        %v347 = vmul.f32 %v315, 6.5
        %v348 = vsub.f32 %v344, %v346
        %v349 = vsub.f32 %v345, %v347
        %v350 = vmul.f32 %v316, 5.0
        %v351 = vmul.f32 %v317, 5.0
        %v352 = vadd.f32 %v348, %v350
        %v353 = vadd.f32 %v349, %v351
        %v354 = vmul.f32 %v320, 1.25
        %v355 = vmul.f32 %v321, 1.25
        %v356 = vsub.f32 %v352, %v354
        %v357 = vsub.f32 %v353, %v355
        %v358 = vand.u32 2147483647, %v356
        %v359 = vand.u32 2147483647, %v357
        %360 = vrot.lane.b32.xlu0 %v340, 127
        %v361 = vpop.permute.xlu0 %360
        %362 = vrot.lane.b32.xlu0 %v341, 127
        %v363 = vpop.permute.xlu0 %362
        %v364 = vsel %vm163, %v361, %v363
        %v365 = vsel %vm163, %v363, %v361
        %366 = vrot.lane.b32.xlu0 %v300, 127
        %v367 = vpop.permute.xlu0 %366
        %368 = vrot.lane.b32.xlu0 %v301, 127
        %v369 = vpop.permute.xlu0 %368
        %v370 = vsel %vm163, %v367, %v369
        %v371 = vsel %vm163, %v369, %v367
        %372 = vrot.lane.b32.xlu0 %v358, 127
        %v373 = vpop.permute.xlu0 %372
        %374 = vrot.lane.b32.xlu0 %v359, 127
        %v375 = vpop.permute.xlu0 %374
        %v376 = vsel %vm163, %v373, %v375
        %v377 = vsel %vm163, %v375, %v373
        %v378 = vmax.f32 %v358, %v376
        %v379 = vmax.f32 %v359, %v377
        %v380 = vadd.f32 %v340, %v364
        %v381 = vadd.f32 %v341, %v365
        %v382 = vmul.f32 %v380, 0.5
        %v383 = vmul.f32 %v381, 0.5
        %v384 = vmul.f32 %v378, 0.5
        %v385 = vmul.f32 %v379, 0.5
        %v386 = vsub.f32 %v370, %v300
        %v387 = vsub.f32 %v371, %v301
        %v388 = vmul.f32 %v384, %v386
        %v389 = vmul.f32 %v385, %v387
        %v390 = vsub.f32 %v382, %v388
        %v391 = vsub.f32 %v383, %v389
        %392 = vrot.lane.b32.xlu0 %v390, 1
        %v393 = vpop.permute.xlu0 %392
        %394 = vrot.lane.b32.xlu0 %v391, 1
        %v395 = vpop.permute.xlu0 %394
        %v396 = vsel %vm256, %v393, %v395
        %v397 = vsel %vm256, %v395, %v393
        %v398 = vsub.f32 %v390, %v397
        %v399 = vsub.f32 %v391, %v396
        %v400 = vmul.f32 %v398, 0.4
        %v401 = vmul.f32 %v399, 0.4
        %v402 = vsub.f32 %v300, %v400
        %v403 = vsub.f32 %v301, %v401
        %404 = vrot.lane.b32.xlu0 %v402, 127
        %v405 = vpop.permute.xlu0 %404
        %406 = vrot.lane.b32.xlu0 %v403, 127
        %v407 = vpop.permute.xlu0 %406
        %v408 = vsel %vm163, %v405, %v407
        %v409 = vsel %vm163, %v407, %v405
        %410 = vrot.lane.b32.xlu0 %v402, 1
        %v411 = vpop.permute.xlu0 %410
        %412 = vrot.lane.b32.xlu0 %v403, 1
        %v413 = vpop.permute.xlu0 %412
        %v414 = vsel %vm256, %v411, %v413
        %v415 = vsel %vm256, %v413, %v411
        %v416 = vsel %vm118, %v408, %v402
        %v417 = vsel %vm119, %v409, %v403
        %v418 = vsel %vm120, %v415, %v416
        %v419 = vsel %vm121, %v414, %v417
        %v420 = vsel %vm122, 0.0, %v418
        %v421 = vsel %vm123, 0.0, %v419
        %v424 = vcombine.low %v420, %v421
        %v426 = vunpack.c.l.s4 1983009808
        %v427 = vunpack.c.0.s8 %v426
        %v428 = vlaneseq
        %v429 = vshrl.u32 %v428, 7
        %v430 = vsub.s32 %v427, %v429
        %v431 = vrot.slane %v424, %v430
        %s433 = scalar_lea.vmem %s107, 4 [#allocation6]
        %434 = vst [vmem:[%s433] sm:$0xf] %v431
        %v435 = vmul.f32 %v420, %v420
        %v436 = vmul.f32 %v421, %v421
        %v437 = vmul.f32 %v435, %v420
        %v438 = vmul.f32 %v436, %v421
        %v439 = vmul.f32 %v435, %v435
        %v440 = vmul.f32 %v436, %v436
        %v441 = vmul.f32 %v439, %v420
        %v442 = vmul.f32 %v440, %v421
        %v443 = vmul.f32 %v439, %v435
        %v444 = vmul.f32 %v440, %v436
        %v445 = vmul.f32 %v420, 1.5
        %v446 = vmul.f32 %v421, 1.5
        %v447 = vmul.f32 %v435, 0.625
        %v448 = vmul.f32 %v436, 0.625
        %v449 = vadd.f32 %v445, %v447
        %v450 = vadd.f32 %v446, %v448
        %v451 = vmul.f32 %v437, 2.1666667
        %v452 = vmul.f32 %v438, 2.1666667
        %v453 = vsub.f32 %v449, %v451
        %v454 = vsub.f32 %v450, %v452
        %v455 = vmul.f32 %v439, 1.25
        %v456 = vmul.f32 %v440, 1.25
        %v457 = vadd.f32 %v453, %v455
        %v458 = vadd.f32 %v454, %v456
        %v459 = vmul.f32 %v443, 0.20833333
        %v460 = vmul.f32 %v444, 0.20833333
        %v461 = vsub.f32 %v457, %v459
        %v462 = vsub.f32 %v458, %v460
        %v463 = vmul.f32 %v420, 1.25
        %v464 = vmul.f32 %v421, 1.25
        %v465 = vadd.f32 %v463, 1.5
        %v466 = vadd.f32 %v464, 1.5
        %v467 = vmul.f32 %v435, 6.5
        %v468 = vmul.f32 %v436, 6.5
        %v469 = vsub.f32 %v465, %v467
        %v470 = vsub.f32 %v466, %v468
        %v471 = vmul.f32 %v437, 5.0
        %v472 = vmul.f32 %v438, 5.0
        %v473 = vadd.f32 %v469, %v471
        %v474 = vadd.f32 %v470, %v472
        %v475 = vmul.f32 %v441, 1.25
        %v476 = vmul.f32 %v442, 1.25
        %v477 = vsub.f32 %v473, %v475
        %v478 = vsub.f32 %v474, %v476
        %v479 = vand.u32 2147483647, %v477
        %v480 = vand.u32 2147483647, %v478
        %481 = vrot.lane.b32.xlu0 %v461, 127
        %v482 = vpop.permute.xlu0 %481
        %483 = vrot.lane.b32.xlu0 %v462, 127
        %v484 = vpop.permute.xlu0 %483
        %v485 = vsel %vm163, %v482, %v484
        %v486 = vsel %vm163, %v484, %v482
        %487 = vrot.lane.b32.xlu0 %v420, 127
        %v488 = vpop.permute.xlu0 %487
        %489 = vrot.lane.b32.xlu0 %v421, 127
        %v490 = vpop.permute.xlu0 %489
        %v491 = vsel %vm163, %v488, %v490
        %v492 = vsel %vm163, %v490, %v488
        %493 = vrot.lane.b32.xlu0 %v479, 127
        %v494 = vpop.permute.xlu0 %493
        %495 = vrot.lane.b32.xlu0 %v480, 127
        %v496 = vpop.permute.xlu0 %495
        %v497 = vsel %vm163, %v494, %v496
        %v498 = vsel %vm163, %v496, %v494
        %v499 = vmax.f32 %v479, %v497
        %v500 = vmax.f32 %v480, %v498
        %v501 = vadd.f32 %v461, %v485
        %v502 = vadd.f32 %v462, %v486
        %v503 = vmul.f32 %v501, 0.5
        %v504 = vmul.f32 %v502, 0.5
        %v505 = vmul.f32 %v499, 0.5
        %v506 = vmul.f32 %v500, 0.5
        %v507 = vsub.f32 %v491, %v420
        %v508 = vsub.f32 %v492, %v421
        %v509 = vmul.f32 %v505, %v507
        %v510 = vmul.f32 %v506, %v508
        %v511 = vsub.f32 %v503, %v509
        %v512 = vsub.f32 %v504, %v510
        %513 = vrot.lane.b32.xlu0 %v511, 1
        %v514 = vpop.permute.xlu0 %513
        %515 = vrot.lane.b32.xlu0 %v512, 1
        %v516 = vpop.permute.xlu0 %515
        %v517 = vsel %vm256, %v514, %v516
        %v518 = vsel %vm256, %v516, %v514
        %v519 = vsub.f32 %v511, %v518
        %v520 = vsub.f32 %v512, %v517
        %v521 = vmul.f32 %v519, 0.4
        %v522 = vmul.f32 %v520, 0.4
        %v523 = vsub.f32 %v420, %v521
        %v524 = vsub.f32 %v421, %v522
        %525 = vrot.lane.b32.xlu0 %v523, 127
        %v526 = vpop.permute.xlu0 %525
        %527 = vrot.lane.b32.xlu0 %v524, 127
        %v528 = vpop.permute.xlu0 %527
        %v529 = vsel %vm163, %v526, %v528
        %v530 = vsel %vm163, %v528, %v526
        %531 = vrot.lane.b32.xlu0 %v523, 1
        %v532 = vpop.permute.xlu0 %531
        %533 = vrot.lane.b32.xlu0 %v524, 1
        %v534 = vpop.permute.xlu0 %533
        %v535 = vsel %vm256, %v532, %v534
        %v536 = vsel %vm256, %v534, %v532
        %v537 = vsel %vm118, %v529, %v523
        %v538 = vsel %vm119, %v530, %v524
        %v539 = vsel %vm120, %v536, %v537
        %v540 = vsel %vm121, %v535, %v538
        %v541 = vsel %vm122, 0.0, %v539
        %v542 = vsel %vm123, 0.0, %v540
        %v545 = vcombine.low %v541, %v542
        %v547 = vunpack.c.l.s4 1983009808
        %v548 = vunpack.c.0.s8 %v547
        %v549 = vlaneseq
        %v550 = vshrl.u32 %v549, 7
        %v551 = vsub.s32 %v548, %v550
        %v552 = vrot.slane %v545, %v551
        %s554 = scalar_lea.vmem %s107, 8 [#allocation6]
        %555 = vst [vmem:[%s554] sm:$0xf] %v552
        %v556 = vmul.f32 %v541, %v541
        %v557 = vmul.f32 %v542, %v542
        %v558 = vmul.f32 %v556, %v541
        %v559 = vmul.f32 %v557, %v542
        %v560 = vmul.f32 %v556, %v556
        %v561 = vmul.f32 %v557, %v557
        %v562 = vmul.f32 %v560, %v541
        %v563 = vmul.f32 %v561, %v542
        %v564 = vmul.f32 %v560, %v556
        %v565 = vmul.f32 %v561, %v557
        %v566 = vmul.f32 %v541, 1.5
        %v567 = vmul.f32 %v542, 1.5
        %v568 = vmul.f32 %v556, 0.625
        %v569 = vmul.f32 %v557, 0.625
        %v570 = vadd.f32 %v566, %v568
        %v571 = vadd.f32 %v567, %v569
        %v572 = vmul.f32 %v558, 2.1666667
        %v573 = vmul.f32 %v559, 2.1666667
        %v574 = vsub.f32 %v570, %v572
        %v575 = vsub.f32 %v571, %v573
        %v576 = vmul.f32 %v560, 1.25
        %v577 = vmul.f32 %v561, 1.25
        %v578 = vadd.f32 %v574, %v576
        %v579 = vadd.f32 %v575, %v577
        %v580 = vmul.f32 %v564, 0.20833333
        %v581 = vmul.f32 %v565, 0.20833333
        %v582 = vsub.f32 %v578, %v580
        %v583 = vsub.f32 %v579, %v581
        %v584 = vmul.f32 %v541, 1.25
        %v585 = vmul.f32 %v542, 1.25
        %v586 = vadd.f32 %v584, 1.5
        %v587 = vadd.f32 %v585, 1.5
        %v588 = vmul.f32 %v556, 6.5
        %v589 = vmul.f32 %v557, 6.5
        %v590 = vsub.f32 %v586, %v588
        %v591 = vsub.f32 %v587, %v589
        %v592 = vmul.f32 %v558, 5.0
        %v593 = vmul.f32 %v559, 5.0
        %v594 = vadd.f32 %v590, %v592
        %v595 = vadd.f32 %v591, %v593
        %v596 = vmul.f32 %v562, 1.25
        %v597 = vmul.f32 %v563, 1.25
        %v598 = vsub.f32 %v594, %v596
        %v599 = vsub.f32 %v595, %v597
        %v600 = vand.u32 2147483647, %v598
        %v601 = vand.u32 2147483647, %v599
        %602 = vrot.lane.b32.xlu0 %v582, 127
        %v603 = vpop.permute.xlu0 %602
        %604 = vrot.lane.b32.xlu0 %v583, 127
        %v605 = vpop.permute.xlu0 %604
        %v606 = vsel %vm163, %v603, %v605
        %v607 = vsel %vm163, %v605, %v603
        %608 = vrot.lane.b32.xlu0 %v541, 127
        %v609 = vpop.permute.xlu0 %608
        %610 = vrot.lane.b32.xlu0 %v542, 127
        %v611 = vpop.permute.xlu0 %610
        %v612 = vsel %vm163, %v609, %v611
        %v613 = vsel %vm163, %v611, %v609
        %614 = vrot.lane.b32.xlu0 %v600, 127
        %v615 = vpop.permute.xlu0 %614
        %616 = vrot.lane.b32.xlu0 %v601, 127
        %v617 = vpop.permute.xlu0 %616
        %v618 = vsel %vm163, %v615, %v617
        %v619 = vsel %vm163, %v617, %v615
        %v620 = vmax.f32 %v600, %v618
        %v621 = vmax.f32 %v601, %v619
        %v622 = vadd.f32 %v582, %v606
        %v623 = vadd.f32 %v583, %v607
        %v624 = vmul.f32 %v622, 0.5
        %v625 = vmul.f32 %v623, 0.5
        %v626 = vmul.f32 %v620, 0.5
        %v627 = vmul.f32 %v621, 0.5
        %v628 = vsub.f32 %v612, %v541
        %v629 = vsub.f32 %v613, %v542
        %v630 = vmul.f32 %v626, %v628
        %v631 = vmul.f32 %v627, %v629
        %v632 = vsub.f32 %v624, %v630
        %v633 = vsub.f32 %v625, %v631
        %634 = vrot.lane.b32.xlu0 %v632, 1
        %v635 = vpop.permute.xlu0 %634
        %636 = vrot.lane.b32.xlu0 %v633, 1
        %v637 = vpop.permute.xlu0 %636
        %v638 = vsel %vm256, %v635, %v637
        %v639 = vsel %vm256, %v637, %v635
        %v640 = vsub.f32 %v632, %v639
        %v641 = vsub.f32 %v633, %v638
        %v642 = vmul.f32 %v640, 0.4
        %v643 = vmul.f32 %v641, 0.4
        %v644 = vsub.f32 %v541, %v642
        %v645 = vsub.f32 %v542, %v643
        %646 = vrot.lane.b32.xlu0 %v644, 127
        %v647 = vpop.permute.xlu0 %646
        %648 = vrot.lane.b32.xlu0 %v645, 127
        %v649 = vpop.permute.xlu0 %648
        %v650 = vsel %vm163, %v647, %v649
        %v651 = vsel %vm163, %v649, %v647
        %652 = vrot.lane.b32.xlu0 %v644, 1
        %v653 = vpop.permute.xlu0 %652
        %654 = vrot.lane.b32.xlu0 %v645, 1
        %v655 = vpop.permute.xlu0 %654
        %v656 = vsel %vm256, %v653, %v655
        %v657 = vsel %vm256, %v655, %v653
        %v658 = vsel %vm118, %v650, %v644
        %v659 = vsel %vm119, %v651, %v645
        %v660 = vsel %vm120, %v657, %v658
        %v661 = vsel %vm121, %v656, %v659
        %v662 = vsel %vm122, 0.0, %v660
        %v663 = vsel %vm123, 0.0, %v661
        %v666 = vcombine.low %v662, %v663
        %v668 = vunpack.c.l.s4 1983009808
        %v669 = vunpack.c.0.s8 %v668
        %v670 = vlaneseq
        %v671 = vshrl.u32 %v670, 7
        %v672 = vsub.s32 %v669, %v671
        %v673 = vrot.slane %v666, %v672
        %s675 = scalar_lea.vmem %s107, 12 [#allocation6]
        %676 = vst [vmem:[%s675] sm:$0xf] %v673
        %v677 = vmul.f32 %v662, %v662
        %v678 = vmul.f32 %v663, %v663
        %v679 = vmul.f32 %v677, %v662
        %v680 = vmul.f32 %v678, %v663
        %v681 = vmul.f32 %v677, %v677
        %v682 = vmul.f32 %v678, %v678
        %v683 = vmul.f32 %v681, %v662
        %v684 = vmul.f32 %v682, %v663
        %v685 = vmul.f32 %v681, %v677
        %v686 = vmul.f32 %v682, %v678
        %v687 = vmul.f32 %v662, 1.5
        %v688 = vmul.f32 %v663, 1.5
        %v689 = vmul.f32 %v677, 0.625
        %v690 = vmul.f32 %v678, 0.625
        %v691 = vadd.f32 %v687, %v689
        %v692 = vadd.f32 %v688, %v690
        %v693 = vmul.f32 %v679, 2.1666667
        %v694 = vmul.f32 %v680, 2.1666667
        %v695 = vsub.f32 %v691, %v693
        %v696 = vsub.f32 %v692, %v694
        %v697 = vmul.f32 %v681, 1.25
        %v698 = vmul.f32 %v682, 1.25
        %v699 = vadd.f32 %v695, %v697
        %v700 = vadd.f32 %v696, %v698
        %v701 = vmul.f32 %v685, 0.20833333
        %v702 = vmul.f32 %v686, 0.20833333
        %v703 = vsub.f32 %v699, %v701
        %v704 = vsub.f32 %v700, %v702
        %v705 = vmul.f32 %v662, 1.25
        %v706 = vmul.f32 %v663, 1.25
        %v707 = vadd.f32 %v705, 1.5
        %v708 = vadd.f32 %v706, 1.5
        %v709 = vmul.f32 %v677, 6.5
        %v710 = vmul.f32 %v678, 6.5
        %v711 = vsub.f32 %v707, %v709
        %v712 = vsub.f32 %v708, %v710
        %v713 = vmul.f32 %v679, 5.0
        %v714 = vmul.f32 %v680, 5.0
        %v715 = vadd.f32 %v711, %v713
        %v716 = vadd.f32 %v712, %v714
        %v717 = vmul.f32 %v683, 1.25
        %v718 = vmul.f32 %v684, 1.25
        %v719 = vsub.f32 %v715, %v717
        %v720 = vsub.f32 %v716, %v718
        %v721 = vand.u32 2147483647, %v719
        %v722 = vand.u32 2147483647, %v720
        %723 = vrot.lane.b32.xlu0 %v703, 127
        %v724 = vpop.permute.xlu0 %723
        %725 = vrot.lane.b32.xlu0 %v704, 127
        %v726 = vpop.permute.xlu0 %725
        %v727 = vsel %vm163, %v724, %v726
        %v728 = vsel %vm163, %v726, %v724
        %729 = vrot.lane.b32.xlu0 %v662, 127
        %v730 = vpop.permute.xlu0 %729
        %731 = vrot.lane.b32.xlu0 %v663, 127
        %v732 = vpop.permute.xlu0 %731
        %v733 = vsel %vm163, %v730, %v732
        %v734 = vsel %vm163, %v732, %v730
        %735 = vrot.lane.b32.xlu0 %v721, 127
        %v736 = vpop.permute.xlu0 %735
        %737 = vrot.lane.b32.xlu0 %v722, 127
        %v738 = vpop.permute.xlu0 %737
        %v739 = vsel %vm163, %v736, %v738
        %v740 = vsel %vm163, %v738, %v736
        %v741 = vmax.f32 %v721, %v739
        %v742 = vmax.f32 %v722, %v740
        %v743 = vadd.f32 %v703, %v727
        %v744 = vadd.f32 %v704, %v728
        %v745 = vmul.f32 %v743, 0.5
        %v746 = vmul.f32 %v744, 0.5
        %v747 = vmul.f32 %v741, 0.5
        %v748 = vmul.f32 %v742, 0.5
        %v749 = vsub.f32 %v733, %v662
        %v750 = vsub.f32 %v734, %v663
        %v751 = vmul.f32 %v747, %v749
        %v752 = vmul.f32 %v748, %v750
        %v753 = vsub.f32 %v745, %v751
        %v754 = vsub.f32 %v746, %v752
        %755 = vrot.lane.b32.xlu0 %v753, 1
        %v756 = vpop.permute.xlu0 %755
        %757 = vrot.lane.b32.xlu0 %v754, 1
        %v758 = vpop.permute.xlu0 %757
        %v759 = vsel %vm256, %v756, %v758
        %v760 = vsel %vm256, %v758, %v756
        %v761 = vsub.f32 %v753, %v760
        %v762 = vsub.f32 %v754, %v759
        %v763 = vmul.f32 %v761, 0.4
        %v764 = vmul.f32 %v762, 0.4
        %v765 = vsub.f32 %v662, %v763
        %v766 = vsub.f32 %v663, %v764
        %767 = vrot.lane.b32.xlu0 %v765, 127
        %v768 = vpop.permute.xlu0 %767
        %769 = vrot.lane.b32.xlu0 %v766, 127
        %v770 = vpop.permute.xlu0 %769
        %v771 = vsel %vm163, %v768, %v770
        %v772 = vsel %vm163, %v770, %v768
        %773 = vrot.lane.b32.xlu0 %v765, 1
        %v774 = vpop.permute.xlu0 %773
        %775 = vrot.lane.b32.xlu0 %v766, 1
        %v776 = vpop.permute.xlu0 %775
        %v777 = vsel %vm256, %v774, %v776
        %v778 = vsel %vm256, %v776, %v774
        %v779 = vsel %vm118, %v771, %v765
        %v780 = vsel %vm119, %v772, %v766
        %v781 = vsel %vm120, %v778, %v779
        %v782 = vsel %vm121, %v777, %v780
        %v783 = vsel %vm122, 0.0, %v781
        %v784 = vsel %vm123, 0.0, %v782
        %v787 = vcombine.low %v783, %v784
        %v789 = vunpack.c.l.s4 1983009808
        %v790 = vunpack.c.0.s8 %v789
        %v791 = vlaneseq
        %v792 = vshrl.u32 %v791, 7
        %v793 = vsub.s32 %v790, %v792
        %v794 = vrot.slane %v787, %v793
        %s796 = scalar_lea.vmem %s107, 16 [#allocation6]
        %797 = vst [vmem:[%s796] sm:$0xf] %v794
        %v798 = vmul.f32 %v783, %v783
        %v799 = vmul.f32 %v784, %v784
        %v800 = vmul.f32 %v798, %v783
        %v801 = vmul.f32 %v799, %v784
        %v802 = vmul.f32 %v798, %v798
        %v803 = vmul.f32 %v799, %v799
        %v804 = vmul.f32 %v802, %v783
        %v805 = vmul.f32 %v803, %v784
        %v806 = vmul.f32 %v802, %v798
        %v807 = vmul.f32 %v803, %v799
        %v808 = vmul.f32 %v783, 1.5
        %v809 = vmul.f32 %v784, 1.5
        %v810 = vmul.f32 %v798, 0.625
        %v811 = vmul.f32 %v799, 0.625
        %v812 = vadd.f32 %v808, %v810
        %v813 = vadd.f32 %v809, %v811
        %v814 = vmul.f32 %v800, 2.1666667
        %v815 = vmul.f32 %v801, 2.1666667
        %v816 = vsub.f32 %v812, %v814
        %v817 = vsub.f32 %v813, %v815
        %v818 = vmul.f32 %v802, 1.25
        %v819 = vmul.f32 %v803, 1.25
        %v820 = vadd.f32 %v816, %v818
        %v821 = vadd.f32 %v817, %v819
        %v822 = vmul.f32 %v806, 0.20833333
        %v823 = vmul.f32 %v807, 0.20833333
        %v824 = vsub.f32 %v820, %v822
        %v825 = vsub.f32 %v821, %v823
        %v826 = vmul.f32 %v783, 1.25
        %v827 = vmul.f32 %v784, 1.25
        %v828 = vadd.f32 %v826, 1.5
        %v829 = vadd.f32 %v827, 1.5
        %v830 = vmul.f32 %v798, 6.5
        %v831 = vmul.f32 %v799, 6.5
        %v832 = vsub.f32 %v828, %v830
        %v833 = vsub.f32 %v829, %v831
        %v834 = vmul.f32 %v800, 5.0
        %v835 = vmul.f32 %v801, 5.0
        %v836 = vadd.f32 %v832, %v834
        %v837 = vadd.f32 %v833, %v835
        %v838 = vmul.f32 %v804, 1.25
        %v839 = vmul.f32 %v805, 1.25
        %v840 = vsub.f32 %v836, %v838
        %v841 = vsub.f32 %v837, %v839
        %v842 = vand.u32 2147483647, %v840
        %v843 = vand.u32 2147483647, %v841
        %844 = vrot.lane.b32.xlu0 %v824, 127
        %v845 = vpop.permute.xlu0 %844
        %846 = vrot.lane.b32.xlu0 %v825, 127
        %v847 = vpop.permute.xlu0 %846
        %v848 = vsel %vm163, %v845, %v847
        %v849 = vsel %vm163, %v847, %v845
        %850 = vrot.lane.b32.xlu0 %v783, 127
        %v851 = vpop.permute.xlu0 %850
        %852 = vrot.lane.b32.xlu0 %v784, 127
        %v853 = vpop.permute.xlu0 %852
        %v854 = vsel %vm163, %v851, %v853
        %v855 = vsel %vm163, %v853, %v851
        %856 = vrot.lane.b32.xlu0 %v842, 127
        %v857 = vpop.permute.xlu0 %856
        %858 = vrot.lane.b32.xlu0 %v843, 127
        %v859 = vpop.permute.xlu0 %858
        %v860 = vsel %vm163, %v857, %v859
        %v861 = vsel %vm163, %v859, %v857
        %v862 = vmax.f32 %v842, %v860
        %v863 = vmax.f32 %v843, %v861
        %v864 = vadd.f32 %v824, %v848
        %v865 = vadd.f32 %v825, %v849
        %v866 = vmul.f32 %v864, 0.5
        %v867 = vmul.f32 %v865, 0.5
        %v868 = vmul.f32 %v862, 0.5
        %v869 = vmul.f32 %v863, 0.5
        %v870 = vsub.f32 %v854, %v783
        %v871 = vsub.f32 %v855, %v784
        %v872 = vmul.f32 %v868, %v870
        %v873 = vmul.f32 %v869, %v871
        %v874 = vsub.f32 %v866, %v872
        %v875 = vsub.f32 %v867, %v873
        %876 = vrot.lane.b32.xlu0 %v874, 1
        %v877 = vpop.permute.xlu0 %876
        %878 = vrot.lane.b32.xlu0 %v875, 1
        %v879 = vpop.permute.xlu0 %878
        %v880 = vsel %vm256, %v877, %v879
        %v881 = vsel %vm256, %v879, %v877
        %v882 = vsub.f32 %v874, %v881
        %v883 = vsub.f32 %v875, %v880
        %v884 = vmul.f32 %v882, 0.4
        %v885 = vmul.f32 %v883, 0.4
        %v886 = vsub.f32 %v783, %v884
        %v887 = vsub.f32 %v784, %v885
        %888 = vrot.lane.b32.xlu0 %v886, 127
        %v889 = vpop.permute.xlu0 %888
        %890 = vrot.lane.b32.xlu0 %v887, 127
        %v891 = vpop.permute.xlu0 %890
        %v892 = vsel %vm163, %v889, %v891
        %v893 = vsel %vm163, %v891, %v889
        %894 = vrot.lane.b32.xlu0 %v886, 1
        %v895 = vpop.permute.xlu0 %894
        %896 = vrot.lane.b32.xlu0 %v887, 1
        %v897 = vpop.permute.xlu0 %896
        %v898 = vsel %vm256, %v895, %v897
        %v899 = vsel %vm256, %v897, %v895
        %v900 = vsel %vm118, %v892, %v886
        %v901 = vsel %vm119, %v893, %v887
        %v902 = vsel %vm120, %v899, %v900
        %v903 = vsel %vm121, %v898, %v901
        %v904 = vsel %vm122, 0.0, %v902
        %v905 = vsel %vm123, 0.0, %v903
        %v908 = vcombine.low %v904, %v905
        %v910 = vunpack.c.l.s4 1983009808
        %v911 = vunpack.c.0.s8 %v910
        %v912 = vlaneseq
        %v913 = vshrl.u32 %v912, 7
        %v914 = vsub.s32 %v911, %v913
        %v915 = vrot.slane %v908, %v914
        %s917 = scalar_lea.vmem %s107, 20 [#allocation6]
        %918 = vst [vmem:[%s917] sm:$0xf] %v915
        %v919 = vmul.f32 %v904, %v904
        %v920 = vmul.f32 %v905, %v905
        %v921 = vmul.f32 %v919, %v904
        %v922 = vmul.f32 %v920, %v905
        %v923 = vmul.f32 %v919, %v919
        %v924 = vmul.f32 %v920, %v920
        %v925 = vmul.f32 %v923, %v904
        %v926 = vmul.f32 %v924, %v905
        %v927 = vmul.f32 %v923, %v919
        %v928 = vmul.f32 %v924, %v920
        %v929 = vmul.f32 %v904, 1.5
        %v930 = vmul.f32 %v905, 1.5
        %v931 = vmul.f32 %v919, 0.625
        %v932 = vmul.f32 %v920, 0.625
        %v933 = vadd.f32 %v929, %v931
        %v934 = vadd.f32 %v930, %v932
        %v935 = vmul.f32 %v921, 2.1666667
        %v936 = vmul.f32 %v922, 2.1666667
        %v937 = vsub.f32 %v933, %v935
        %v938 = vsub.f32 %v934, %v936
        %v939 = vmul.f32 %v923, 1.25
        %v940 = vmul.f32 %v924, 1.25
        %v941 = vadd.f32 %v937, %v939
        %v942 = vadd.f32 %v938, %v940
        %v943 = vmul.f32 %v927, 0.20833333
        %v944 = vmul.f32 %v928, 0.20833333
        %v945 = vsub.f32 %v941, %v943
        %v946 = vsub.f32 %v942, %v944
        %v947 = vmul.f32 %v904, 1.25
        %v948 = vmul.f32 %v905, 1.25
        %v949 = vadd.f32 %v947, 1.5
        %v950 = vadd.f32 %v948, 1.5
        %v951 = vmul.f32 %v919, 6.5
        %v952 = vmul.f32 %v920, 6.5
        %v953 = vsub.f32 %v949, %v951
        %v954 = vsub.f32 %v950, %v952
        %v955 = vmul.f32 %v921, 5.0
        %v956 = vmul.f32 %v922, 5.0
        %v957 = vadd.f32 %v953, %v955
        %v958 = vadd.f32 %v954, %v956
        %v959 = vmul.f32 %v925, 1.25
        %v960 = vmul.f32 %v926, 1.25
        %v961 = vsub.f32 %v957, %v959
        %v962 = vsub.f32 %v958, %v960
        %v963 = vand.u32 2147483647, %v961
        %v964 = vand.u32 2147483647, %v962
        %965 = vrot.lane.b32.xlu0 %v945, 127
        %v966 = vpop.permute.xlu0 %965
        %967 = vrot.lane.b32.xlu0 %v946, 127
        %v968 = vpop.permute.xlu0 %967
        %v969 = vsel %vm163, %v966, %v968
        %v970 = vsel %vm163, %v968, %v966
        %971 = vrot.lane.b32.xlu0 %v904, 127
        %v972 = vpop.permute.xlu0 %971
        %973 = vrot.lane.b32.xlu0 %v905, 127
        %v974 = vpop.permute.xlu0 %973
        %v975 = vsel %vm163, %v972, %v974
        %v976 = vsel %vm163, %v974, %v972
        %977 = vrot.lane.b32.xlu0 %v963, 127
        %v978 = vpop.permute.xlu0 %977
        %979 = vrot.lane.b32.xlu0 %v964, 127
        %v980 = vpop.permute.xlu0 %979
        %v981 = vsel %vm163, %v978, %v980
        %v982 = vsel %vm163, %v980, %v978
        %v983 = vmax.f32 %v963, %v981
        %v984 = vmax.f32 %v964, %v982
        %v985 = vadd.f32 %v945, %v969
        %v986 = vadd.f32 %v946, %v970
        %v987 = vmul.f32 %v985, 0.5
        %v988 = vmul.f32 %v986, 0.5
        %v989 = vmul.f32 %v983, 0.5
        %v990 = vmul.f32 %v984, 0.5
        %v991 = vsub.f32 %v975, %v904
        %v992 = vsub.f32 %v976, %v905
        %v993 = vmul.f32 %v989, %v991
        %v994 = vmul.f32 %v990, %v992
        %v995 = vsub.f32 %v987, %v993
        %v996 = vsub.f32 %v988, %v994
        %997 = vrot.lane.b32.xlu0 %v995, 1
        %v998 = vpop.permute.xlu0 %997
        %999 = vrot.lane.b32.xlu0 %v996, 1
        %v1000 = vpop.permute.xlu0 %999
        %v1001 = vsel %vm256, %v998, %v1000
        %v1002 = vsel %vm256, %v1000, %v998
        %v1003 = vsub.f32 %v995, %v1002
        %v1004 = vsub.f32 %v996, %v1001
        %v1005 = vmul.f32 %v1003, 0.4
        %v1006 = vmul.f32 %v1004, 0.4
        %v1007 = vsub.f32 %v904, %v1005
        %v1008 = vsub.f32 %v905, %v1006
        %1009 = vrot.lane.b32.xlu0 %v1007, 127
        %v1010 = vpop.permute.xlu0 %1009
        %1011 = vrot.lane.b32.xlu0 %v1008, 127
        %v1012 = vpop.permute.xlu0 %1011
        %v1013 = vsel %vm163, %v1010, %v1012
        %v1014 = vsel %vm163, %v1012, %v1010
        %1015 = vrot.lane.b32.xlu0 %v1007, 1
        %v1016 = vpop.permute.xlu0 %1015
        %1017 = vrot.lane.b32.xlu0 %v1008, 1
        %v1018 = vpop.permute.xlu0 %1017
        %v1019 = vsel %vm256, %v1016, %v1018
        %v1020 = vsel %vm256, %v1018, %v1016
        %v1021 = vsel %vm118, %v1013, %v1007
        %v1022 = vsel %vm119, %v1014, %v1008
        %v1023 = vsel %vm120, %v1020, %v1021
        %v1024 = vsel %vm121, %v1019, %v1022
        %v1025 = vsel %vm122, 0.0, %v1023
        %v1026 = vsel %vm123, 0.0, %v1024
        %v1029 = vcombine.low %v1025, %v1026
        %v1031 = vunpack.c.l.s4 1983009808
        %v1032 = vunpack.c.0.s8 %v1031
        %v1033 = vlaneseq
        %v1034 = vshrl.u32 %v1033, 7
        %v1035 = vsub.s32 %v1032, %v1034
        %v1036 = vrot.slane %v1029, %v1035
        %s1038 = scalar_lea.vmem %s107, 24 [#allocation6]
        %1039 = vst [vmem:[%s1038] sm:$0xf] %v1036
        %v1040 = vmul.f32 %v1025, %v1025
        %v1041 = vmul.f32 %v1026, %v1026
        %v1042 = vmul.f32 %v1040, %v1025
        %v1043 = vmul.f32 %v1041, %v1026
        %v1044 = vmul.f32 %v1040, %v1040
        %v1045 = vmul.f32 %v1041, %v1041
        %v1046 = vmul.f32 %v1044, %v1025
        %v1047 = vmul.f32 %v1045, %v1026
        %v1048 = vmul.f32 %v1044, %v1040
        %v1049 = vmul.f32 %v1045, %v1041
        %v1050 = vmul.f32 %v1025, 1.5
        %v1051 = vmul.f32 %v1026, 1.5
        %v1052 = vmul.f32 %v1040, 0.625
        %v1053 = vmul.f32 %v1041, 0.625
        %v1054 = vadd.f32 %v1050, %v1052
        %v1055 = vadd.f32 %v1051, %v1053
        %v1056 = vmul.f32 %v1042, 2.1666667
        %v1057 = vmul.f32 %v1043, 2.1666667
        %v1058 = vsub.f32 %v1054, %v1056
        %v1059 = vsub.f32 %v1055, %v1057
        %v1060 = vmul.f32 %v1044, 1.25
        %v1061 = vmul.f32 %v1045, 1.25
        %v1062 = vadd.f32 %v1058, %v1060
        %v1063 = vadd.f32 %v1059, %v1061
        %v1064 = vmul.f32 %v1048, 0.20833333
        %v1065 = vmul.f32 %v1049, 0.20833333
        %v1066 = vsub.f32 %v1062, %v1064
        %v1067 = vsub.f32 %v1063, %v1065
        %v1068 = vmul.f32 %v1025, 1.25
        %v1069 = vmul.f32 %v1026, 1.25
        %v1070 = vadd.f32 %v1068, 1.5
        %v1071 = vadd.f32 %v1069, 1.5
        %v1072 = vmul.f32 %v1040, 6.5
        %v1073 = vmul.f32 %v1041, 6.5
        %v1074 = vsub.f32 %v1070, %v1072
        %v1075 = vsub.f32 %v1071, %v1073
        %v1076 = vmul.f32 %v1042, 5.0
        %v1077 = vmul.f32 %v1043, 5.0
        %v1078 = vadd.f32 %v1074, %v1076
        %v1079 = vadd.f32 %v1075, %v1077
        %v1080 = vmul.f32 %v1046, 1.25
        %v1081 = vmul.f32 %v1047, 1.25
        %v1082 = vsub.f32 %v1078, %v1080
        %v1083 = vsub.f32 %v1079, %v1081
        %v1084 = vand.u32 2147483647, %v1082
        %v1085 = vand.u32 2147483647, %v1083
        %1086 = vrot.lane.b32.xlu0 %v1066, 127
        %v1087 = vpop.permute.xlu0 %1086
        %1088 = vrot.lane.b32.xlu0 %v1067, 127
        %v1089 = vpop.permute.xlu0 %1088
        %v1090 = vsel %vm163, %v1087, %v1089
        %v1091 = vsel %vm163, %v1089, %v1087
        %1092 = vrot.lane.b32.xlu0 %v1025, 127
        %v1093 = vpop.permute.xlu0 %1092
        %1094 = vrot.lane.b32.xlu0 %v1026, 127
        %v1095 = vpop.permute.xlu0 %1094
        %v1096 = vsel %vm163, %v1093, %v1095
        %v1097 = vsel %vm163, %v1095, %v1093
        %1098 = vrot.lane.b32.xlu0 %v1084, 127
        %v1099 = vpop.permute.xlu0 %1098
        %1100 = vrot.lane.b32.xlu0 %v1085, 127
        %v1101 = vpop.permute.xlu0 %1100
        %v1102 = vsel %vm163, %v1099, %v1101
        %v1103 = vsel %vm163, %v1101, %v1099
        %v1104 = vmax.f32 %v1084, %v1102
        %v1105 = vmax.f32 %v1085, %v1103
        %v1106 = vadd.f32 %v1066, %v1090
        %v1107 = vadd.f32 %v1067, %v1091
        %v1108 = vmul.f32 %v1106, 0.5
        %v1109 = vmul.f32 %v1107, 0.5
        %v1110 = vmul.f32 %v1104, 0.5
        %v1111 = vmul.f32 %v1105, 0.5
        %v1112 = vsub.f32 %v1096, %v1025
        %v1113 = vsub.f32 %v1097, %v1026
        %v1114 = vmul.f32 %v1110, %v1112
        %v1115 = vmul.f32 %v1111, %v1113
        %v1116 = vsub.f32 %v1108, %v1114
        %v1117 = vsub.f32 %v1109, %v1115
        %1118 = vrot.lane.b32.xlu0 %v1116, 1
        %v1119 = vpop.permute.xlu0 %1118
        %1120 = vrot.lane.b32.xlu0 %v1117, 1
        %v1121 = vpop.permute.xlu0 %1120
        %v1122 = vsel %vm256, %v1119, %v1121
        %v1123 = vsel %vm256, %v1121, %v1119
        %v1124 = vsub.f32 %v1116, %v1123
        %v1125 = vsub.f32 %v1117, %v1122
        %v1126 = vmul.f32 %v1124, 0.4
        %v1127 = vmul.f32 %v1125, 0.4
        %v1128 = vsub.f32 %v1025, %v1126
        %v1129 = vsub.f32 %v1026, %v1127
        %1130 = vrot.lane.b32.xlu0 %v1128, 127
        %v1131 = vpop.permute.xlu0 %1130
        %1132 = vrot.lane.b32.xlu0 %v1129, 127
        %v1133 = vpop.permute.xlu0 %1132
        %v1134 = vsel %vm163, %v1131, %v1133
        %v1135 = vsel %vm163, %v1133, %v1131
        %1136 = vrot.lane.b32.xlu0 %v1128, 1
        %v1137 = vpop.permute.xlu0 %1136
        %1138 = vrot.lane.b32.xlu0 %v1129, 1
        %v1139 = vpop.permute.xlu0 %1138
        %v1140 = vsel %vm256, %v1137, %v1139
        %v1141 = vsel %vm256, %v1139, %v1137
        %v1142 = vsel %vm118, %v1134, %v1128
        %v1143 = vsel %vm119, %v1135, %v1129
        %v1144 = vsel %vm120, %v1141, %v1142
        %v1145 = vsel %vm121, %v1140, %v1143
        %v1146 = vsel %vm122, 0.0, %v1144
        %v1147 = vsel %vm123, 0.0, %v1145
        %v1150 = vcombine.low %v1146, %v1147
        %v1152 = vunpack.c.l.s4 1983009808
        %v1153 = vunpack.c.0.s8 %v1152
        %v1154 = vlaneseq
        %v1155 = vshrl.u32 %v1154, 7
        %v1156 = vsub.s32 %v1153, %v1155
        %v1157 = vrot.slane %v1150, %v1156
        %s1159 = scalar_lea.vmem %s107, 28 [#allocation6]
        %1160 = vst [vmem:[%s1159] sm:$0xf] %v1157
        %1161 = vst [vmem:[#allocation2] sm:$0xf] %v1157
        %s1162 = sand.u32 %s45, 1
        %s1163 = scalar_lea.sflag [#allocation5], %s1162
        %s1164 = sand.u32 %s45, 1
        %s1165 = smul.addr %s1164, 32
        %s1166 = scalar_lea.vmem [#allocation6], %s1165
        // Predicated region
        $region33: #{tpu_custom_call.1} parent=23 // pred_check
          %p1167 = pneg %p55
        $region34: #{tpu_custom_call.1} parent=23 // pred_check_branch
          %1169 = sbr.rel (%p1167) target = $region36
        $region35: #{tpu_custom_call.1} parent=23 // pred_region
          %s1170 = smul.u32 8, %s16
          %s1172 = ssub.s32 512, 512
          %1173 = vsyncadd %s1163, %s1172
          %s1174 = smul.addr %s1170, 2
          %s1175 = smul.addr %s1174, 32
          %s1176 = scalar_lea.hbm %s1, %s1175
          %s1177 = sshll.u32 %s1166, 4
          %s1178 = int_to_ptr.vmem [resolvable:$true] %s1177
          %1183 = dma.vmem_to_hbm [thread:$0]  %s1178, 512, %s1176, %s1163, 64, 64, 4
        $region36: #{tpu_custom_call.1} parent=23 // pred_fallthru
          _
      $region24: #{tpu_custom_call.1} parent=5 // pred_fallthru
        _
      %p1184 = scmp.le.s32.totalorder 2, %s11
      // Predicated region
      $region37: #{tpu_custom_call.1} parent=5 // pred_check
        %p1185 = pneg %p1184
      $region38: #{tpu_custom_call.1} parent=5 // pred_check_branch
        %1187 = sbr.rel (%p1185) target = $region40
      $region39: #{tpu_custom_call.1} parent=5 // pred_region
        %s1188 = ssub.s32 %s11, 2
        // Predicated region
        $region41: #{tpu_custom_call.1} parent=39 // pred_check
          %p1189 = pneg %p61
        $region42: #{tpu_custom_call.1} parent=39 // pred_check_branch
          %1191 = sbr.rel (%p1189) target = $region44
        $region43: #{tpu_custom_call.1} parent=39 // pred_region
          %s1192 = sand.u32 %s46, 1
          %s1193 = scalar_lea.sflag [#allocation5], %s1192
          %s1194 = sand.u32 %s46, 1
          %s1195 = smul.addr %s1194, 32
          %s1196 = scalar_lea.vmem [#allocation6], %s1195
          %1197 = dma.done %s1193, 512
        $region44: #{tpu_custom_call.1} parent=39 // pred_fallthru
          _
      $region40: #{tpu_custom_call.1} parent=5 // pred_fallthru
        _
    $region6: #{tpu_custom_call.1} parent=1 // loop_footer
      %s15 = sadd.s32 1, %s11
    $region7: #{tpu_custom_call.1} parent=1 // loop_footer_branch
      %10 = sbr.rel target = $region3
    $region8: #{tpu_custom_call.1} parent=1 // loop_exit
      _
    %1198 = vsyncpa [#allocation4], 1
    %s1199 = scalar_lea.sflag [#allocation4], 1
    %1200 = vsyncpa %s1199, 1
    %1201 = vsyncpa [#allocation5], 1
    %s1202 = scalar_lea.sflag [#allocation5], 1
    %1203 = vsyncpa %s1202, 1

</llo_original>
